<compile_context>
chip_gen: v6e
topology: v6e:2x2x1
jax: 0.10.0
libtpu: 0.0.40
codegen_flags: <defaults>
</compile_context>

<pallas_src>
import functools

import jax
import jax.numpy as jnp
from jax import lax
from jax.experimental import pallas as pl
from jax.experimental.pallas import tpu as pltpu

LANE = 128
HGRP = 32              # lane-group width holding one node's (<=32) hidden features
GPACK = LANE // HGRP   # 4 j-nodes packed per 128-lane row


def _silu(x):
    # x*sigmoid(x) == 0.5*x*(1+tanh(x/2)): one EUP op (tanh) instead of exp+recip.
    return 0.5 * x * (1.0 + jnp.tanh(0.5 * x))


def _round_up(x, m):
    return ((x + m - 1) // m) * m


def _choose_tile(n):
    t = min(128, _round_up(max(n, 32), 32))
    if n > 64:
        # keep >= 2 i-tiles so the "parallel" axis can feed both TensorCores (v7x)
        t = min(t, _round_up((n + 1) // 2, 32))
    return t


def _device_kind():
    try:
        return jax.devices()[0].device_kind.lower()
    except Exception:
        return ""


def _pad2(a, rows, cols, dtype=jnp.float32):
    a = jnp.asarray(a, dtype)
    out = jnp.zeros((rows, cols), dtype)
    return out.at[:a.shape[0], :a.shape[1]].set(a)


# ---------------------------------------------------------------------------
# Kernel 1: fused node prologue
# ---------------------------------------------------------------------------
def _node_encode_kernel(x_ref, lig_ref, prot_ref, trow_ref,
                        w1s, b1s, w2af, b2af, w1r, b1r, w2r, b2r, wpqr, bpqr,
                        p_ref, q_ref, r_ref):
    f32, bf16 = jnp.float32, jnp.bfloat16
    xb = x_ref[...].astype(bf16)

    # ligand branch: atom + FG layer-1 weights stacked -> one matmul; layer-2
    # weights fused into one (128,256) RHS (fills the 256-wide MXU on v6e/v7x).
    h1 = _silu(jnp.dot(xb, w1s[...], preferred_element_type=f32) + b1s[...])
    af = jnp.dot(h1.astype(bf16), w2af[...], preferred_element_type=f32) + b2af[...]
    lig = jnp.where(lig_ref[...] > 0.5, af[:, 0:LANE], af[:, LANE:2 * LANE])

    # protein (residue) branch
    hp = _silu(jnp.dot(xb, w1r[...], preferred_element_type=f32) + b1r[...])
    prot = jnp.dot(hp.astype(bf16), w2r[...], preferred_element_type=f32) + b2r[...]

    h = jnp.where(prot_ref[...] > 0.5, prot, lig) + trow_ref[...]   # time feature lane

    # per-node halves of split phi_e / phi_h layer-1 weights, one (128,384) RHS:
    #   p (we_i x4 lane-tiled, be1 folded) | q (we_j) | r (wh_h, bh1 folded)
    pqr = jnp.dot(h.astype(bf16), wpqr[...], preferred_element_type=f32) + bpqr[...]
    p_ref[...] = pqr[:, 0:LANE]
    q_ref[...] = pqr[:, LANE:2 * LANE]
    r_ref[...] = pqr[:, 2 * LANE:3 * LANE]


# ---------------------------------------------------------------------------
# Kernel 2: tiled EGNN edge kernel (+ fused atom_decoder epilogue)
# hidden dim packed: edge (i, 4*jb+g) lives in lane group g of packed row jb.
# ---------------------------------------------------------------------------
def _egnn_edge_kernel(cut2_lig, cut2_prot, cut2_cross, cdt,
                      p_ref, q_ref, r_ref,
                      xi_ref, yi_ref, zi_ref, xyzj_ref,
                      bi_ref, bj_ref, pi_ref, pj_ref, upd_ref,
                      wd2_ref, we2_ref, be2_ref, wx1_ref, bx1_ref,
                      wx2_ref, bx2_ref, whm_ref, wh2_ref, bh2_ref,
                      wdec1_ref, bdec1_ref, wdec2_ref, bdec2_ref,
                      dec_ref, pdelta_ref, macc_ref, pacc_ref):
    f32, bf16 = jnp.float32, jnp.bfloat16
    kj = pl.program_id(1)

    @pl.when(kj == 0)
    def _():
        macc_ref[...] = jnp.zeros_like(macc_ref)
        pacc_ref[...] = jnp.zeros_like(pacc_ref)

    # --- geometry (exact f32 differences, no Gram cancellation) ---
    xj = xyzj_ref[0][None, :, :]
    yj = xyzj_ref[1][None, :, :]
    zj = xyzj_ref[2][None, :, :]
    dx = xi_ref[...][:, :, None] - xj                 # (TI,TJG,128) f32
    dy = yi_ref[...][:, :, None] - yj
    dz = zi_ref[...][:, :, None] - zj
    d2 = dx * dx + dy * dy + dz * dz

    # --- get_edges(): same batch AND type-dependent cutoff (self-edges included,
    #     matching the reference adjacency); one f32 mask reused everywhere ---
    same_b = bi_ref[...][:, :, None] == bj_ref[...][None, :, :]
    is_pi = pi_ref[...][:, :, None] == 1
    is_pj = pj_ref[...][None, :, :] == 1
    pp = jnp.logical_and(is_pi, is_pj)
    ll = jnp.logical_and(jnp.logical_not(is_pi), jnp.logical_not(is_pj))
    cut2 = jnp.where(pp, jnp.float32(cut2_prot),
                     jnp.where(ll, jnp.float32(cut2_lig), jnp.float32(cut2_cross)))
    a = jnp.logical_and(same_b, d2 < cut2).astype(f32)

    # --- phi_e messages: elementwise in `cdt` (bf16 on v6e/v7x, f32 on v5e),
    #     matmuls on merged leading dims with f32 accumulation ---
    p_c = p_ref[...].astype(cdt)                      # (TI,128)  per-i half, x4 tiled
    q_c = q_ref[...].astype(cdt)                      # (TJG,128) per-j half, packed
    d2w = d2.astype(cdt) * wd2_ref[...].astype(cdt)[None, :, :]
    m1 = _silu(p_c[:, None, :] + q_c[None, :, :] + d2w)
    ti, tjg, _ = m1.shape
    m1_2d = m1.reshape(ti * tjg, LANE)
    m2_2d = _silu((jnp.dot(m1_2d.astype(bf16), we2_ref[...],
                           preferred_element_type=f32) + be2_ref[...]).astype(cdt))
    m2 = m2_2d.reshape(ti, tjg, LANE)
    macc_ref[...] += jnp.sum(m2 * a, axis=1)          # f32 accumulate over j grid axis

    # --- phi_x edge weights; coordinate path kept f32 ---
    cwh_2d = _silu((jnp.dot(m2_2d.astype(bf16), wx1_ref[...],
                            preferred_element_type=f32) + bx1_ref[...]).astype(cdt))
    cwh = cwh_2d.reshape(ti, tjg, LANE)
    # per-lane share of cw_ij: summing a group's 32 lanes gives <cwh, wx2> + bx2
    cwm = (cwh * wx2_ref[...][None, :, :] + bx2_ref[...][None, :, :]) * a
    sx = jnp.sum(jnp.sum(cwm * dx, axis=1), axis=1, keepdims=True)   # (TI,1)
    sy = jnp.sum(jnp.sum(cwm * dy, axis=1), axis=1, keepdims=True)
    sz = jnp.sum(jnp.sum(cwm * dz, axis=1), axis=1, keepdims=True)
    lanes = lax.broadcasted_iota(jnp.int32, (ti, LANE), 1)
    pacc_ref[...] += (jnp.where(lanes == 0, sx, 0.0)
                      + jnp.where(lanes == 1, sy, 0.0)
                      + jnp.where(lanes == 2, sz, 0.0))

    @pl.when(kj == pl.num_programs(1) - 1)
    def _():
        # phi_h node update (4-group reduction of macc folded into whm row tiling)
        hid = _silu(r_ref[...] + jnp.dot(macc_ref[...].astype(bf16), whm_ref[...],
                                         preferred_element_type=f32))
        hout = jnp.dot(hid.astype(bf16), wh2_ref[...],
                       preferred_element_type=f32) + bh2_ref[...]
        # fused atom_decoder
        dh = _silu(jnp.dot(hout.astype(bf16), wdec1_ref[...],
                           preferred_element_type=f32) + bdec1_ref[...])
        dec_ref[...] = jnp.dot(dh.astype(bf16), wdec2_ref[...],
                               preferred_element_type=f32) + bdec2_ref[...]
        pdelta_ref[...] = pacc_ref[...] * upd_ref[...]     # update_coords_mask


# ---------------------------------------------------------------------------
# Parameters: deterministic logical init (shapes from the module __init__) and
# packing into lane-dense, stacked / split / group-packed kernel operands.
# ---------------------------------------------------------------------------
def _linear(key, fin, fout):
    k1, k2 = jax.random.split(key)
    return (jax.random.normal(k1, (fin, fout), jnp.float32) * 0.1,
            jax.random.normal(k2, (1, fout), jnp.float32) * 0.1)


def init_params(key, ligand_features, protein_features, joint_features, hidden_features):
    ks = jax.random.split(key, 14)
    fl, fp, j, hdim = ligand_features, protein_features, joint_features, hidden_features
    d = j + 1  # dynamics_node_nf
    return {
        'atom_encoder':    _linear(ks[0], fl, 2 * fl) + _linear(ks[1], 2 * fl, j),
        'fg_encoder':      _linear(ks[2], fl, 2 * fl) + _linear(ks[3], 2 * fl, j),
        'residue_encoder': _linear(ks[4], fp, 2 * fp) + _linear(ks[5], 2 * fp, j),
        'atom_decoder':    _linear(ks[6], j, 2 * fl) + _linear(ks[7], 2 * fl, fl),
        'egnn': (_linear(ks[8], 2 * d + 1, hdim) + _linear(ks[9], hdim, hdim)    # phi_e
                 + _linear(ks[10], hdim, hdim) + _linear(ks[11], hdim, 1)        # phi_x
                 + _linear(ks[12], d + hdim, hdim) + _linear(ks[13], hdim, j)),  # phi_h
    }


def pack_params(params, ligand_features, protein_features, joint_features, hidden_features):
    f32, bf16 = jnp.float32, jnp.bfloat16
    fl, fp, j, hdim = ligand_features, protein_features, joint_features, hidden_features
    d = j + 1
    half = LANE // 2
    # TODO(synk): hidden_features > 32 needs a different (or no) lane packing.
    assert hdim <= HGRP, "hidden_features must be <= 32 for the 4-way lane packing"
    assert 2 * fl <= half and max(d, j, fp, 2 * fp) <= LANE

    w1a, b1a, w2a, b2a = params['atom_encoder']
    w1f, b1f, w2f, b2f = params['fg_encoder']
    w1r, b1r, w2r, b2r = params['residue_encoder']
    wd1, bd1, wd2, bd2 = params['atom_decoder']
    (we1, be1, we2, be2, wx1, bx1, wx2, bx2, wh1, bh1, wh2, bh2) = params['egnn']

    # split phi_e / phi_h layer-1 weights (kills the concat inputs in the edge kernel)
    we_i, we_j, w_d2 = we1[:d], we1[d:2 * d], we1[2 * d]
    wh_h, wh_m = wh1[:d], wh1[d:]

    def tile_cols(w):          # (rows,hdim) -> (128,128), cols copied per lane group
        out = jnp.zeros((LANE, LANE), f32)
        for g in range(GPACK):
            out = out.at[:w.shape[0], g * HGRP:g * HGRP + w.shape[1]].set(w)
        return out

    def tile_row(v):           # (hdim,) -> (1,128), tiled per lane group
        v = jnp.asarray(v, f32).reshape(-1)
        out = jnp.zeros((1, LANE), f32)
        for g in range(GPACK):
            out = out.at[0, g * HGRP:g * HGRP + v.shape[0]].set(v)
        return out

    def block_diag(w):         # (hdim,hdim) -> (128,128), one block per lane group
        out = jnp.zeros((LANE, LANE), f32)
        for g in range(GPACK):
            out = out.at[g * HGRP:g * HGRP + w.shape[0],
                         g * HGRP:g * HGRP + w.shape[1]].set(w)
        return out

    def tile_rows(w):          # (hdim,cols) -> (128,128), rows copied per lane group
        out = jnp.zeros((LANE, LANE), f32)
        for g in range(GPACK):
            out = out.at[g * HGRP:g * HGRP + w.shape[0], :w.shape[1]].set(w)
        return out

    # ---- kernel-1 operands ----
    w1s = (jnp.zeros((LANE, LANE), f32)
           .at[:fl, :2 * fl].set(w1a).at[:fl, half:half + 2 * fl].set(w1f))
    b1s = (jnp.zeros((1, LANE), f32)
           .at[:, :2 * fl].set(b1a).at[:, half:half + 2 * fl].set(b1f))
    w2af = (jnp.zeros((LANE, 2 * LANE), f32)
            .at[:2 * fl, :j].set(w2a).at[half:half + 2 * fl, LANE:LANE + j].set(w2f))
    b2af = jnp.zeros((1, 2 * LANE), f32).at[:, :j].set(b2a).at[:, LANE:LANE + j].set(b2f)
    w1r_p = jnp.zeros((LANE, LANE), f32).at[:fp, :2 * fp].set(w1r)
    w2r_p = jnp.zeros((LANE, LANE), f32).at[:2 * fp, :j].set(w2r)
    wpqr = jnp.concatenate([tile_cols(we_i), _pad2(we_j, LANE, LANE),
                            _pad2(wh_h, LANE, LANE)], axis=1)
    bpqr = jnp.concatenate([tile_row(be1), jnp.zeros((1, LANE), f32),
                            _pad2(bh1, 1, LANE)], axis=1)
    enc_w = (w1s.astype(bf16), b1s, w2af.astype(bf16), b2af,
             w1r_p.astype(bf16), _pad2(b1r, 1, LANE),
             w2r_p.astype(bf16), _pad2(b2r, 1, LANE),
             wpqr.astype(bf16), bpqr)

    # ---- kernel-2 operands (hidden dim packed: 4 nodes per 128-lane row) ----
    bx2_scalar = jnp.asarray(bx2, f32).reshape(())
    egnn_w = (
        tile_row(w_d2),                                    # d2 row of we1, lane-tiled
        block_diag(we2).astype(bf16), tile_row(be2),
        block_diag(wx1).astype(bf16), tile_row(bx1),
        tile_row(wx2[:, 0]),                               # phi_x output weights
        jnp.full((1, LANE), bx2_scalar / HGRP, f32),       # per-lane share of bx2
        tile_rows(wh_m).astype(bf16),                      # folds 4-group reduction
        _pad2(wh2, LANE, LANE).astype(bf16), _pad2(bh2, 1, LANE),
        _pad2(wd1, LANE, LANE).astype(bf16), _pad2(bd1, 1, LANE),
        _pad2(wd2, LANE, LANE).astype(bf16), _pad2(bd2, 1, LANE),
    )
    return {'enc': enc_w, 'egnn': egnn_w, 'joint': j, 'hidden': hdim}


# ---------------------------------------------------------------------------
# Forward pass
# ---------------------------------------------------------------------------
def estimator_forward(packed, pos_ligand, pos_protein, x_ligand, x_protein,
                      batch_ligand, batch_protein, t, ligand_mask,
                      edge_cutoff=(None, None, None),
                      egnn_velocity_parametrization=True):
    f32 = jnp.float32
    enc_w, egnn_w, joint = packed['enc'], packed['egnn'], packed['joint']
    if edge_cutoff is None or isinstance(edge_cutoff, (int, float)):
        edge_cutoff = (edge_cutoff, edge_cutoff, edge_cutoff)

    kind = _device_kind()
    # bf16 elementwise on v6e/v7x (bf16 VALU/EUP); f32 on v5e.  Per-generation VMEM cap.
    cdt = jnp.float32 if 'v5' in kind else jnp.bfloat16
    vmem_limit = (40 if 'v7' in kind else 64) * 1024 * 1024

    n_l, fl = x_ligand.shape
    n_p = x_protein.shape[0]
    n = n_l + n_p
    tile = _choose_tile(n)
    n_pad = _round_up(n, tile)
    np4, tjg = n_pad // GPACK, tile // GPACK

    # ---- padded, lane-dense node tensors ----
    x_all = jnp.zeros((n_pad, LANE), f32)
    x_all = x_all.at[:n_l, :x_ligand.shape[1]].set(x_ligand.astype(f32))
    x_all = x_all.at[n_l:n, :x_protein.shape[1]].set(x_protein.astype(f32))

    lig_col = jnp.zeros((n_pad, 1), f32).at[:n_l, 0].set(ligand_mask.astype(f32))
    prot_col_f = jnp.zeros((n_pad, 1), f32).at[n_l:n, 0].set(1.0)

    batch = jnp.full((n_pad,), -1, jnp.int32)       # -1 padding => no edges to real nodes
    batch = batch.at[:n_l].set(batch_ligand.astype(jnp.int32))
    batch = batch.at[n_l:n].set(batch_protein.astype(jnp.int32))
    is_prot = jnp.zeros((n_pad,), jnp.int32).at[n_l:n].set(1)

    pos = jnp.concatenate([pos_ligand, pos_protein], axis=0).astype(f32)
    pos_pad = jnp.zeros((n_pad, 3), f32).at[:n].set(pos)
    xi_col, yi_col, zi_col = (pos_pad[:, c:c + 1] for c in range(3))

    # group-packed j-side tensors: node 4*jb+g occupies lanes [32g, 32g+32) of row jb
    def grp(v):
        return jnp.repeat(v, HGRP).reshape(np4, LANE)
    xyzj_grp = jnp.stack([grp(pos_pad[:, c]) for c in range(3)], axis=0)
    batchj_grp, protj_grp = grp(batch), grp(is_prot)

    # scalar-t path of the reference (np.prod(t.size()) == 1)
    # TODO(synk): per-graph t[batch] time path not implemented.
    time_row = jnp.zeros((1, LANE), f32).at[0, joint].set(jnp.asarray(t, f32))

    # ---- kernel 1: fused encoders + per-node halves of phi_e / phi_h ----
    row1 = lambda i: (i, 0)
    c1 = lambda i: (0, 0)
    p, q, r = pl.pallas_call(
        _node_encode_kernel,
        grid=(n_pad // tile,),
        in_specs=[pl.BlockSpec((tile, LANE), row1),
                  pl.BlockSpec((tile, 1), row1),
                  pl.BlockSpec((tile, 1), row1),
                  pl.BlockSpec((1, LANE), c1)]
                 + [pl.BlockSpec(w.shape, c1) for w in enc_w],
        out_specs=(pl.BlockSpec((tile, LANE), row1),
                   pl.BlockSpec((tile, LANE), row1),
                   pl.BlockSpec((tile, LANE), row1)),
        out_shape=(jax.ShapeDtypeStruct((n_pad, LANE), f32),
                   jax.ShapeDtypeStruct((n_pad, LANE), f32),
                   jax.ShapeDtypeStruct((n_pad, LANE), f32)),
        compiler_params=pltpu.CompilerParams(dimension_semantics=("parallel",)),
    )(x_all, lig_col, prot_col_f, time_row, *enc_w)

    q_grp = q[:, :HGRP].reshape(np4, LANE)          # pack 4 nodes' hidden per row

    # ---- kernel 2: tiled EGNN edge kernel + fused atom_decoder epilogue ----
    cl, cp, cc = edge_cutoff
    inf = float('inf')
    cl2 = float(cl) ** 2 if cl is not None else inf
    cp2 = float(cp) ** 2 if cp is not None else inf
    cc2 = float(cc) ** 2 if cc is not None else inf

    rowi = lambda i, j: (i, 0)
    rowj = lambda i, j: (j, 0)
    c2 = lambda i, j: (0, 0)
    dec, pdelta = pl.pallas_call(
        functools.partial(_egnn_edge_kernel, cl2, cp2, cc2, cdt),
        grid=(n_pad // tile, n_pad // tile),
        in_specs=[pl.BlockSpec((tile, LANE), rowi),                     # p (rows i, x4)
                  pl.BlockSpec((tjg, LANE), rowj),                      # q (packed rows j)
                  pl.BlockSpec((tile, LANE), rowi),                     # r (rows i)
                  pl.BlockSpec((tile, 1), rowi),                        # x_i
                  pl.BlockSpec((tile, 1), rowi),                        # y_i
                  pl.BlockSpec((tile, 1), rowi),                        # z_i
                  pl.BlockSpec((3, tjg, LANE), lambda i, j: (0, j, 0)),  # pos_j (packed)
                  pl.BlockSpec((tile, 1), rowi),                        # batch_i
                  pl.BlockSpec((tjg, LANE), rowj),                      # batch_j (packed)
                  pl.BlockSpec((tile, 1), rowi),                        # is_protein_i
                  pl.BlockSpec((tjg, LANE), rowj),                      # is_protein_j
                  pl.BlockSpec((tile, 1), rowi)]                        # update_coords_mask
                 + [pl.BlockSpec(w.shape, c2) for w in egnn_w],
        out_specs=(pl.BlockSpec((tile, LANE), rowi),
                   pl.BlockSpec((tile, LANE), rowi)),
        out_shape=(jax.ShapeDtypeStruct((n_pad, LANE), f32),
                   jax.ShapeDtypeStruct((n_pad, LANE), f32)),
        scratch_shapes=[pltpu.VMEM((tile, LANE), f32),   # message aggregation
                        pltpu.VMEM((tile, LANE), f32)],  # coordinate delta
        compiler_params=pltpu.CompilerParams(
            dimension_semantics=("parallel", "arbitrary"),
            vmem_limit_bytes=vmem_limit),
    )(p, q_grp, r, xi_col, yi_col, zi_col, xyzj_grp,
      batch[:, None], batchj_grp, is_prot[:, None], protj_grp, lig_col, *egnn_w)

    pos_delta = pdelta[:n, :3]
    pos_out = pos_delta if egnn_velocity_parametrization else pos + pos_delta
    pos_out = jnp.where(jnp.any(jnp.isnan(pos_out)),
                        jnp.zeros_like(pos_out), pos_out)   # reference zeroes whole tensor

    x_final_ligand = dec[:n_l, :fl]
    pos_out_ligand = pos_out[:n_l]
    # TODO(synk): boolean-mask gather is dynamic-shape; done eagerly outside the kernels.
    return x_final_ligand[ligand_mask], pos_out_ligand[ligand_mask]


if __name__ == "__main__":
    key = jax.random.PRNGKey(0)
    ligand_features, protein_features = 8, 10
    joint_features, hidden_features = 16, 32
    n_l, n_p = 8, 16

    k_par, k_pl, k_pp, k_xl, k_xp = jax.random.split(key, 5)
    params = init_params(k_par, ligand_features, protein_features,
                         joint_features, hidden_features)
    packed = pack_params(params, ligand_features, protein_features,
                         joint_features, hidden_features)

    pos_ligand = jax.random.normal(k_pl, (n_l, 3), jnp.float32) * 2.0
    pos_protein = jax.random.normal(k_pp, (n_p, 3), jnp.float32) * 2.0
    x_ligand = jax.random.normal(k_xl, (n_l, ligand_features), jnp.float32)
    x_protein = jax.random.normal(k_xp, (n_p, protein_features), jnp.float32)

    batch_ligand = jnp.array([0] * 4 + [1] * 4, jnp.int32)
    batch_protein = jnp.array([0] * 8 + [1] * 8, jnp.int32)
    ligand_mask = jnp.array([True, False, True, True, False, True, False, True])
    t = 0.3

    x_out, pos_out = estimator_forward(
        packed, pos_ligand, pos_protein, x_ligand, x_protein,
        batch_ligand, batch_protein, t, ligand_mask,
        edge_cutoff=(5.0, 5.0, 5.0))

    jax.block_until_ready((x_out, pos_out))
    n_sel = int(ligand_mask.sum())
    assert x_out.shape == (n_sel, ligand_features)
    assert pos_out.shape == (n_sel, 3)
    assert bool(jnp.all(jnp.isfinite(x_out))) and bool(jnp.all(jnp.isfinite(pos_out)))
    print("KERNEL_OK")
</pallas_src>

<mosaic_0001>
module attributes {stable_mosaic.version = 11 : i64} {
  func.func @_node_encode_kernel(%arg0: i32, %arg1: memref<32x128xf32, #tpu.memory_space<vmem>>, %arg2: memref<32x1xf32, #tpu.memory_space<vmem>>, %arg3: memref<32x1xf32, #tpu.memory_space<vmem>>, %arg4: memref<1x128xf32, #tpu.memory_space<vmem>>, %arg5: memref<128x128xbf16, #tpu.memory_space<vmem>>, %arg6: memref<1x128xf32, #tpu.memory_space<vmem>>, %arg7: memref<128x256xbf16, #tpu.memory_space<vmem>>, %arg8: memref<1x256xf32, #tpu.memory_space<vmem>>, %arg9: memref<128x128xbf16, #tpu.memory_space<vmem>>, %arg10: memref<1x128xf32, #tpu.memory_space<vmem>>, %arg11: memref<128x128xbf16, #tpu.memory_space<vmem>>, %arg12: memref<1x128xf32, #tpu.memory_space<vmem>>, %arg13: memref<128x384xbf16, #tpu.memory_space<vmem>>, %arg14: memref<1x384xf32, #tpu.memory_space<vmem>>, %arg15: memref<32x128xf32, #tpu.memory_space<vmem>>, %arg16: memref<32x128xf32, #tpu.memory_space<vmem>>, %arg17: memref<32x128xf32, #tpu.memory_space<vmem>>) attributes {dimension_semantics = [#tpu.dimension_semantics<parallel>], iteration_bounds = array<i64: 1>, scalar_prefetch = 0 : i64, scratch_operands = 0 : i64, tpu.core_type = #tpu.core_type<tc>, window_params = [{transform_indices = @transform_0, window_bounds = array<i64: 32, 128>}, {transform_indices = @transform_1, window_bounds = array<i64: 32, 1>}, {transform_indices = @transform_2, window_bounds = array<i64: 32, 1>}, {pipeline_mode = #tpu.pipeline_mode<synchronous>, transform_indices = @transform_3, window_bounds = array<i64: 1, 128>}, {pipeline_mode = #tpu.pipeline_mode<synchronous>, transform_indices = @transform_4, window_bounds = array<i64: 128, 128>}, {pipeline_mode = #tpu.pipeline_mode<synchronous>, transform_indices = @transform_5, window_bounds = array<i64: 1, 128>}, {pipeline_mode = #tpu.pipeline_mode<synchronous>, transform_indices = @transform_6, window_bounds = array<i64: 128, 256>}, {pipeline_mode = #tpu.pipeline_mode<synchronous>, transform_indices = @transform_7, window_bounds = array<i64: 1, 256>}, {pipeline_mode = #tpu.pipeline_mode<synchronous>, transform_indices = @transform_8, window_bounds = array<i64: 128, 128>}, {pipeline_mode = #tpu.pipeline_mode<synchronous>, transform_indices = @transform_9, window_bounds = array<i64: 1, 128>}, {pipeline_mode = #tpu.pipeline_mode<synchronous>, transform_indices = @transform_10, window_bounds = array<i64: 128, 128>}, {pipeline_mode = #tpu.pipeline_mode<synchronous>, transform_indices = @transform_11, window_bounds = array<i64: 1, 128>}, {pipeline_mode = #tpu.pipeline_mode<synchronous>, transform_indices = @transform_12, window_bounds = array<i64: 128, 384>}, {pipeline_mode = #tpu.pipeline_mode<synchronous>, transform_indices = @transform_13, window_bounds = array<i64: 1, 384>}, {transform_indices = @transform_14, window_bounds = array<i64: 32, 128>}, {transform_indices = @transform_15, window_bounds = array<i64: 32, 128>}, {transform_indices = @transform_16, window_bounds = array<i64: 32, 128>}]} {
    %c0 = arith.constant 0 : index
    %c0_0 = arith.constant 0 : index
    %0 = vector.load %arg1[%c0, %c0_0] : memref<32x128xf32, #tpu.memory_space<vmem>>, vector<32x128xf32>
    %1 = arith.truncf %0 : vector<32x128xf32> to vector<32x128xbf16>
    %c0_1 = arith.constant 0 : index
    %c0_2 = arith.constant 0 : index
    %2 = vector.load %arg5[%c0_1, %c0_2] : memref<128x128xbf16, #tpu.memory_space<vmem>>, vector<128x128xbf16>
    %cst = arith.constant dense<0.000000e+00> : vector<32x128xf32>
    %3 = tpu.matmul %1, %2, %cst {dimension_numbers = #tpu.dot_dimension_numbers<[1], [0], [0], [1], [0, 0, 1, 1], [], []>} : vector<32x128xbf16>, vector<128x128xbf16>, vector<32x128xf32> -> vector<32x128xf32>
    %c0_3 = arith.constant 0 : index
    %c0_4 = arith.constant 0 : index
    %4 = vector.load %arg6[%c0_3, %c0_4] : memref<1x128xf32, #tpu.memory_space<vmem>>, vector<1x128xf32>
    %5 = vector.broadcast %4 : vector<1x128xf32> to vector<32x128xf32>
    %6 = arith.addf %3, %5 : vector<32x128xf32>
    %cst_5 = arith.constant 5.000000e-01 : f32
    %7 = vector.broadcast %cst_5 : f32 to vector<32x128xf32>
    %8 = arith.mulf %7, %6 : vector<32x128xf32>
    %cst_6 = arith.constant 5.000000e-01 : f32
    %9 = vector.broadcast %cst_6 : f32 to vector<32x128xf32>
    %10 = arith.mulf %9, %6 : vector<32x128xf32>
    %11 = math.tanh %10 : vector<32x128xf32>
    %cst_7 = arith.constant 1.000000e+00 : f32
    %12 = vector.broadcast %cst_7 : f32 to vector<32x128xf32>
    %13 = arith.addf %12, %11 : vector<32x128xf32>
    %14 = arith.mulf %8, %13 : vector<32x128xf32>
    %15 = arith.truncf %14 : vector<32x128xf32> to vector<32x128xbf16>
    %c0_8 = arith.constant 0 : index
    %c0_9 = arith.constant 0 : index
    %16 = vector.load %arg7[%c0_8, %c0_9] : memref<128x256xbf16, #tpu.memory_space<vmem>>, vector<128x256xbf16>
    %cst_10 = arith.constant dense<0.000000e+00> : vector<32x256xf32>
    %17 = tpu.matmul %15, %16, %cst_10 {dimension_numbers = #tpu.dot_dimension_numbers<[1], [0], [0], [1], [0, 0, 1, 1], [], []>} : vector<32x128xbf16>, vector<128x256xbf16>, vector<32x256xf32> -> vector<32x256xf32>
    %c0_11 = arith.constant 0 : index
    %c0_12 = arith.constant 0 : index
    %18 = vector.load %arg8[%c0_11, %c0_12] : memref<1x256xf32, #tpu.memory_space<vmem>>, vector<1x256xf32>
    %19 = vector.broadcast %18 : vector<1x256xf32> to vector<32x256xf32>
    %20 = arith.addf %17, %19 : vector<32x256xf32>
    %c0_13 = arith.constant 0 : index
    %c0_14 = arith.constant 0 : index
    %21 = vector.load %arg2[%c0_13, %c0_14] : memref<32x1xf32, #tpu.memory_space<vmem>>, vector<32x1xf32>
    %cst_15 = arith.constant 5.000000e-01 : f32
    %22 = vector.broadcast %cst_15 : f32 to vector<32x1xf32>
    %23 = arith.cmpf ogt, %21, %22 : vector<32x1xf32>
    %24 = vector.extract_strided_slice %20 {offsets = [0, 0], sizes = [32, 128], strides = [1, 1]} : vector<32x256xf32> to vector<32x128xf32>
    %25 = vector.extract_strided_slice %20 {offsets = [0, 128], sizes = [32, 128], strides = [1, 1]} : vector<32x256xf32> to vector<32x128xf32>
    %26 = vector.shape_cast %23 : vector<32x1xi1> to vector<32x1xi1>
    %27 = vector.broadcast %26 : vector<32x1xi1> to vector<32x128xi1>
    %28 = arith.select %27, %24, %25 : vector<32x128xi1>, vector<32x128xf32>
    %c0_16 = arith.constant 0 : index
    %c0_17 = arith.constant 0 : index
    %29 = vector.load %arg9[%c0_16, %c0_17] : memref<128x128xbf16, #tpu.memory_space<vmem>>, vector<128x128xbf16>
    %cst_18 = arith.constant dense<0.000000e+00> : vector<32x128xf32>
    %30 = tpu.matmul %1, %29, %cst_18 {dimension_numbers = #tpu.dot_dimension_numbers<[1], [0], [0], [1], [0, 0, 1, 1], [], []>} : vector<32x128xbf16>, vector<128x128xbf16>, vector<32x128xf32> -> vector<32x128xf32>
    %c0_19 = arith.constant 0 : index
    %c0_20 = arith.constant 0 : index
    %31 = vector.load %arg10[%c0_19, %c0_20] : memref<1x128xf32, #tpu.memory_space<vmem>>, vector<1x128xf32>
    %32 = vector.broadcast %31 : vector<1x128xf32> to vector<32x128xf32>
    %33 = arith.addf %30, %32 : vector<32x128xf32>
    %cst_21 = arith.constant 5.000000e-01 : f32
    %34 = vector.broadcast %cst_21 : f32 to vector<32x128xf32>
    %35 = arith.mulf %34, %33 : vector<32x128xf32>
    %cst_22 = arith.constant 5.000000e-01 : f32
    %36 = vector.broadcast %cst_22 : f32 to vector<32x128xf32>
    %37 = arith.mulf %36, %33 : vector<32x128xf32>
    %38 = math.tanh %37 : vector<32x128xf32>
    %cst_23 = arith.constant 1.000000e+00 : f32
    %39 = vector.broadcast %cst_23 : f32 to vector<32x128xf32>
    %40 = arith.addf %39, %38 : vector<32x128xf32>
    %41 = arith.mulf %35, %40 : vector<32x128xf32>
    %42 = arith.truncf %41 : vector<32x128xf32> to vector<32x128xbf16>
    %c0_24 = arith.constant 0 : index
    %c0_25 = arith.constant 0 : index
    %43 = vector.load %arg11[%c0_24, %c0_25] : memref<128x128xbf16, #tpu.memory_space<vmem>>, vector<128x128xbf16>
    %cst_26 = arith.constant dense<0.000000e+00> : vector<32x128xf32>
    %44 = tpu.matmul %42, %43, %cst_26 {dimension_numbers = #tpu.dot_dimension_numbers<[1], [0], [0], [1], [0, 0, 1, 1], [], []>} : vector<32x128xbf16>, vector<128x128xbf16>, vector<32x128xf32> -> vector<32x128xf32>
    %c0_27 = arith.constant 0 : index
    %c0_28 = arith.constant 0 : index
    %45 = vector.load %arg12[%c0_27, %c0_28] : memref<1x128xf32, #tpu.memory_space<vmem>>, vector<1x128xf32>
    %46 = vector.broadcast %45 : vector<1x128xf32> to vector<32x128xf32>
    %47 = arith.addf %44, %46 : vector<32x128xf32>
    %c0_29 = arith.constant 0 : index
    %c0_30 = arith.constant 0 : index
    %48 = vector.load %arg3[%c0_29, %c0_30] : memref<32x1xf32, #tpu.memory_space<vmem>>, vector<32x1xf32>
    %cst_31 = arith.constant 5.000000e-01 : f32
    %49 = vector.broadcast %cst_31 : f32 to vector<32x1xf32>
    %50 = arith.cmpf ogt, %48, %49 : vector<32x1xf32>
    %51 = vector.shape_cast %50 : vector<32x1xi1> to vector<32x1xi1>
    %52 = vector.broadcast %51 : vector<32x1xi1> to vector<32x128xi1>
    %53 = arith.select %52, %47, %28 : vector<32x128xi1>, vector<32x128xf32>
    %c0_32 = arith.constant 0 : index
    %c0_33 = arith.constant 0 : index
    %54 = vector.load %arg4[%c0_32, %c0_33] : memref<1x128xf32, #tpu.memory_space<vmem>>, vector<1x128xf32>
    %55 = vector.broadcast %54 : vector<1x128xf32> to vector<32x128xf32>
    %56 = arith.addf %53, %55 : vector<32x128xf32>
    %57 = arith.truncf %56 : vector<32x128xf32> to vector<32x128xbf16>
    %c0_34 = arith.constant 0 : index
    %c0_35 = arith.constant 0 : index
    %58 = vector.load %arg13[%c0_34, %c0_35] : memref<128x384xbf16, #tpu.memory_space<vmem>>, vector<128x384xbf16>
    %cst_36 = arith.constant dense<0.000000e+00> : vector<32x384xf32>
    %59 = tpu.matmul %57, %58, %cst_36 {dimension_numbers = #tpu.dot_dimension_numbers<[1], [0], [0], [1], [0, 0, 1, 1], [], []>} : vector<32x128xbf16>, vector<128x384xbf16>, vector<32x384xf32> -> vector<32x384xf32>
    %c0_37 = arith.constant 0 : index
    %c0_38 = arith.constant 0 : index
    %60 = vector.load %arg14[%c0_37, %c0_38] : memref<1x384xf32, #tpu.memory_space<vmem>>, vector<1x384xf32>
    %61 = vector.broadcast %60 : vector<1x384xf32> to vector<32x384xf32>
    %62 = arith.addf %59, %61 : vector<32x384xf32>
    %63 = vector.extract_strided_slice %62 {offsets = [0, 0], sizes = [32, 128], strides = [1, 1]} : vector<32x384xf32> to vector<32x128xf32>
    %c0_39 = arith.constant 0 : index
    %c0_40 = arith.constant 0 : index
    %64 = vector.load %arg15[%c0_39, %c0_40] : memref<32x128xf32, #tpu.memory_space<vmem>>, vector<32x128xf32>
    tpu.vector_store %arg15[%c0_39, %c0_40], %63 {strides = array<i32>} : memref<32x128xf32, #tpu.memory_space<vmem>>, vector<32x128xf32>,
    %65 = vector.extract_strided_slice %62 {offsets = [0, 128], sizes = [32, 128], strides = [1, 1]} : vector<32x384xf32> to vector<32x128xf32>
    %c0_41 = arith.constant 0 : index
    %c0_42 = arith.constant 0 : index
    %66 = vector.load %arg16[%c0_41, %c0_42] : memref<32x128xf32, #tpu.memory_space<vmem>>, vector<32x128xf32>
    tpu.vector_store %arg16[%c0_41, %c0_42], %65 {strides = array<i32>} : memref<32x128xf32, #tpu.memory_space<vmem>>, vector<32x128xf32>,
    %67 = vector.extract_strided_slice %62 {offsets = [0, 256], sizes = [32, 128], strides = [1, 1]} : vector<32x384xf32> to vector<32x128xf32>
    %c0_43 = arith.constant 0 : index
    %c0_44 = arith.constant 0 : index
    %68 = vector.load %arg17[%c0_43, %c0_44] : memref<32x128xf32, #tpu.memory_space<vmem>>, vector<32x128xf32>
    tpu.vector_store %arg17[%c0_43, %c0_44], %67 {strides = array<i32>} : memref<32x128xf32, #tpu.memory_space<vmem>>, vector<32x128xf32>,
    return
  }
  func.func @transform_0(%arg0: i32) -> (i32, i32) {
    %c0_i32 = arith.constant 0 : i32
    %c0_i32_0 = arith.constant 0 : i32
    return %arg0, %c0_i32 : i32, i32
  }
  func.func @transform_1(%arg0: i32) -> (i32, i32) {
    %c0_i32 = arith.constant 0 : i32
    %c0_i32_0 = arith.constant 0 : i32
    return %arg0, %c0_i32 : i32, i32
  }
  func.func @transform_2(%arg0: i32) -> (i32, i32) {
    %c0_i32 = arith.constant 0 : i32
    %c0_i32_0 = arith.constant 0 : i32
    return %arg0, %c0_i32 : i32, i32
  }
  func.func @transform_3(%arg0: i32) -> (i32, i32) {
    %c0_i32 = arith.constant 0 : i32
    %c0_i32_0 = arith.constant 0 : i32
    %c0_i32_1 = arith.constant 0 : i32
    return %c0_i32, %c0_i32_0 : i32, i32
  }
  func.func @transform_4(%arg0: i32) -> (i32, i32) {
    %c0_i32 = arith.constant 0 : i32
    %c0_i32_0 = arith.constant 0 : i32
    %c0_i32_1 = arith.constant 0 : i32
    return %c0_i32, %c0_i32_0 : i32, i32
  }
  func.func @transform_5(%arg0: i32) -> (i32, i32) {
    %c0_i32 = arith.constant 0 : i32
    %c0_i32_0 = arith.constant 0 : i32
    %c0_i32_1 = arith.constant 0 : i32
    return %c0_i32, %c0_i32_0 : i32, i32
  }
  func.func @transform_6(%arg0: i32) -> (i32, i32) {
    %c0_i32 = arith.constant 0 : i32
    %c0_i32_0 = arith.constant 0 : i32
    %c0_i32_1 = arith.constant 0 : i32
    return %c0_i32, %c0_i32_0 : i32, i32
  }
  func.func @transform_7(%arg0: i32) -> (i32, i32) {
    %c0_i32 = arith.constant 0 : i32
    %c0_i32_0 = arith.constant 0 : i32
    %c0_i32_1 = arith.constant 0 : i32
    return %c0_i32, %c0_i32_0 : i32, i32
  }
  func.func @transform_8(%arg0: i32) -> (i32, i32) {
    %c0_i32 = arith.constant 0 : i32
    %c0_i32_0 = arith.constant 0 : i32
    %c0_i32_1 = arith.constant 0 : i32
    return %c0_i32, %c0_i32_0 : i32, i32
  }
  func.func @transform_9(%arg0: i32) -> (i32, i32) {
    %c0_i32 = arith.constant 0 : i32
    %c0_i32_0 = arith.constant 0 : i32
    %c0_i32_1 = arith.constant 0 : i32
    return %c0_i32, %c0_i32_0 : i32, i32
  }
  func.func @transform_10(%arg0: i32) -> (i32, i32) {
    %c0_i32 = arith.constant 0 : i32
    %c0_i32_0 = arith.constant 0 : i32
    %c0_i32_1 = arith.constant 0 : i32
    return %c0_i32, %c0_i32_0 : i32, i32
  }
  func.func @transform_11(%arg0: i32) -> (i32, i32) {
    %c0_i32 = arith.constant 0 : i32
    %c0_i32_0 = arith.constant 0 : i32
    %c0_i32_1 = arith.constant 0 : i32
    return %c0_i32, %c0_i32_0 : i32, i32
  }
  func.func @transform_12(%arg0: i32) -> (i32, i32) {
    %c0_i32 = arith.constant 0 : i32
    %c0_i32_0 = arith.constant 0 : i32
    %c0_i32_1 = arith.constant 0 : i32
    return %c0_i32, %c0_i32_0 : i32, i32
  }
  func.func @transform_13(%arg0: i32) -> (i32, i32) {
    %c0_i32 = arith.constant 0 : i32
    %c0_i32_0 = arith.constant 0 : i32
    %c0_i32_1 = arith.constant 0 : i32
    return %c0_i32, %c0_i32_0 : i32, i32
  }
  func.func @transform_14(%arg0: i32) -> (i32, i32) {
    %c0_i32 = arith.constant 0 : i32
    %c0_i32_0 = arith.constant 0 : i32
    return %arg0, %c0_i32 : i32, i32
  }
  func.func @transform_15(%arg0: i32) -> (i32, i32) {
    %c0_i32 = arith.constant 0 : i32
    %c0_i32_0 = arith.constant 0 : i32
    return %arg0, %c0_i32 : i32, i32
  }
  func.func @transform_16(%arg0: i32) -> (i32, i32) {
    %c0_i32 = arith.constant 0 : i32
    %c0_i32_0 = arith.constant 0 : i32
    return %arg0, %c0_i32 : i32, i32
  }
}

</mosaic_0001>

<llo_original>
// kernel: tpu_custom_call.1
$region0: #{tpu_custom_call.1}
  #allocation0 [shape = 'u32[]', space=smem, size = 0x4, offset = 0x4, fixed_abs, tag = 'smem constant byte address 0x4 - core index']
  #allocation1 [shape = 'u32[144,128]{1,0:T(1,128)}', space=vmem, size = 0x12000, scoped, tag = 'internal scratch']
  %s0 = inlined_call_operand.hbm [shape: f32[32,128], index: 0, kind: input, shape index: {}]
  %s1 = inlined_call_operand.vmem [shape: f32[32,1], index: 1, kind: input, shape index: {}]
  %s2 = inlined_call_operand.vmem [shape: f32[32,1], index: 2, kind: input, shape index: {}]
  %s3 = inlined_call_operand.vmem [shape: f32[1,128], index: 3, kind: input, shape index: {}]
  %s4 = inlined_call_operand.vmem [shape: bf16[128,128], index: 4, kind: input, shape index: {}]
  %s5 = inlined_call_operand.vmem [shape: f32[1,128], index: 5, kind: input, shape index: {}]
  %s6 = inlined_call_operand.hbm [shape: bf16[128,256], index: 6, kind: input, shape index: {}]
  %s7 = inlined_call_operand.vmem [shape: f32[1,256], index: 7, kind: input, shape index: {}]
  %s8 = inlined_call_operand.hbm [shape: bf16[128,128], index: 8, kind: input, shape index: {}]
  %s9 = inlined_call_operand.vmem [shape: f32[1,128], index: 9, kind: input, shape index: {}]
  %s10 = inlined_call_operand.hbm [shape: bf16[128,128], index: 10, kind: input, shape index: {}]
  %s11 = inlined_call_operand.vmem [shape: f32[1,128], index: 11, kind: input, shape index: {}]
  %s12 = inlined_call_operand.hbm [shape: bf16[128,384], index: 12, kind: input, shape index: {}]
  %s13 = inlined_call_operand.vmem [shape: f32[1,384], index: 13, kind: input, shape index: {}]
  %s14 = inlined_call_operand.hbm [shape: f32[32,128], index: 14, kind: output, shape index: {0}]
  %s15 = inlined_call_operand.hbm [shape: f32[32,128], index: 15, kind: output, shape index: {1}]
  %s16 = inlined_call_operand.hbm [shape: f32[32,128], index: 16, kind: output, shape index: {2}]
  %17 = xla_tuple %s14, %s15, %s16
  %s18 = sld [smem:[#allocation0]]
  $region102: #{tpu_custom_call.1} parent=0
    _
  %s20 = ssub.s32 1, %s18
  %s21 = scalar_select 0, %s20, %s18
  $region1: #{tpu_custom_call.1} parent=0
    #allocation2 [shape = 'u8[16384]{0}', space=vmem, size = 0x4000, scoped, tag = 'input window, operand 0, single buffered']
    #allocation3 [shape = 's32[1]{0}', space=sflag, size = 0x4, scoped, tag = 'scoped memory for tpu_custom_call.1']
    #allocation4 [shape = 's32[1]{0}', space=sflag, size = 0x4, scoped, tag = 'scoped memory for tpu_custom_call.1']
    #allocation5 [shape = 'u8[65536]{0}', space=vmem, size = 0x10000, scoped, tag = 'input window, operand 6, single buffered']
    #allocation6 [shape = 's32[1]{0}', space=sflag, size = 0x4, scoped, tag = 'scoped memory for tpu_custom_call.1']
    #allocation7 [shape = 'u8[32768]{0}', space=vmem, size = 0x8000, scoped, tag = 'input window, operand 8, single buffered']
    #allocation8 [shape = 'u8[32768]{0}', space=vmem, size = 0x8000, scoped, tag = 'input window, operand 10, single buffered']
    #allocation9 [shape = 's32[1]{0}', space=sflag, size = 0x4, scoped, tag = 'scoped memory for tpu_custom_call.1']
    #allocation10 [shape = 'u8[98304]{0}', space=vmem, size = 0x18000, scoped, tag = 'input window, operand 12, single buffered']
    #allocation11 [shape = 'u8[16384]{0}', space=vmem, size = 0x4000, scoped, tag = 'output window, operand 0, single buffered']
    #allocation12 [shape = 'u8[16384]{0}', space=vmem, size = 0x4000, scoped, tag = 'output window, operand 1, single buffered']
    #allocation13 [shape = 's32[1]{0}', space=sflag, size = 0x4, scoped, tag = 'scoped memory for tpu_custom_call.1']
    #allocation14 [shape = 'u8[16384]{0}', space=vmem, size = 0x4000, scoped, tag = 'output window, operand 2, single buffered']
    %22 = vsyncpa [#allocation3], 0
    %23 = vsyncpa [#allocation6], 0
    %24 = vsyncpa [#allocation9], 0
    %25 = vsyncpa [#allocation4], 0
    %26 = vsyncpa [#allocation13], 0
    // Predicated region
    $region2: #{tpu_custom_call.1} parent=1 // pred_check
      _
    $region3: #{tpu_custom_call.1} parent=1 // pred_check_branch
      %28 = sbr.rel (0) target = $region5
    $region4: #{tpu_custom_call.1} parent=1 // pred_region
      %s30 = ssub.s32 512, 512
      %31 = vsyncadd [#allocation3], %s30
      %s32 = sshll.u32 [#allocation2], 4
      %s33 = int_to_ptr.vmem [resolvable:$true] %s32
      %38 = dma.hbm_to_vmem [thread:$0]  %s0, 512, %s33, [#allocation3], 128, 128, 8
    $region5: #{tpu_custom_call.1} parent=1 // pred_fallthru
      _
    // Predicated region
    $region6: #{tpu_custom_call.1} parent=1 // pred_check
      _
    $region7: #{tpu_custom_call.1} parent=1 // pred_check_branch
      %40 = sbr.rel (0) target = $region9
    $region8: #{tpu_custom_call.1} parent=1 // pred_region
      _
    $region9: #{tpu_custom_call.1} parent=1 // pred_fallthru
      _
    // Predicated region
    $region10: #{tpu_custom_call.1} parent=1 // pred_check
      _
    $region11: #{tpu_custom_call.1} parent=1 // pred_check_branch
      %42 = sbr.rel (0) target = $region13
    $region12: #{tpu_custom_call.1} parent=1 // pred_region
      _
    $region13: #{tpu_custom_call.1} parent=1 // pred_fallthru
      _
    // Predicated region
    $region14: #{tpu_custom_call.1} parent=1 // pred_check
      _
    $region15: #{tpu_custom_call.1} parent=1 // pred_check_branch
      %44 = sbr.rel (0) target = $region17
    $region16: #{tpu_custom_call.1} parent=1 // pred_region
      _
    $region17: #{tpu_custom_call.1} parent=1 // pred_fallthru
      _
    // Predicated region
    $region18: #{tpu_custom_call.1} parent=1 // pred_check
      _
    $region19: #{tpu_custom_call.1} parent=1 // pred_check_branch
      %46 = sbr.rel (0) target = $region21
    $region20: #{tpu_custom_call.1} parent=1 // pred_region
      _
    $region21: #{tpu_custom_call.1} parent=1 // pred_fallthru
      _
    // Predicated region
    $region22: #{tpu_custom_call.1} parent=1 // pred_check
      _
    $region23: #{tpu_custom_call.1} parent=1 // pred_check_branch
      %48 = sbr.rel (0) target = $region25
    $region24: #{tpu_custom_call.1} parent=1 // pred_region
      _
    $region25: #{tpu_custom_call.1} parent=1 // pred_fallthru
      _
    // Predicated region
    $region26: #{tpu_custom_call.1} parent=1 // pred_check
      _
    $region27: #{tpu_custom_call.1} parent=1 // pred_check_branch
      %50 = sbr.rel (0) target = $region29
    $region28: #{tpu_custom_call.1} parent=1 // pred_region
      %s52 = ssub.s32 2048, 2048
      %53 = vsyncadd [#allocation6], %s52
      %s54 = sshll.u32 [#allocation5], 4
      %s55 = int_to_ptr.vmem [resolvable:$true] %s54
      %60 = dma.hbm_to_vmem [thread:$0]  %s6, 2048, %s55, [#allocation6], 128, 128, 8
    $region29: #{tpu_custom_call.1} parent=1 // pred_fallthru
      _
    // Predicated region
    $region30: #{tpu_custom_call.1} parent=1 // pred_check
      _
    $region31: #{tpu_custom_call.1} parent=1 // pred_check_branch
      %62 = sbr.rel (0) target = $region33
    $region32: #{tpu_custom_call.1} parent=1 // pred_region
      _
    $region33: #{tpu_custom_call.1} parent=1 // pred_fallthru
      _
    // Predicated region
    $region34: #{tpu_custom_call.1} parent=1 // pred_check
      _
    $region35: #{tpu_custom_call.1} parent=1 // pred_check_branch
      %64 = sbr.rel (0) target = $region37
    $region36: #{tpu_custom_call.1} parent=1 // pred_region
      %s66 = ssub.s32 1024, 1024
      %67 = vsyncadd [#allocation6], %s66
      %s68 = sshll.u32 [#allocation7], 4
      %s69 = int_to_ptr.vmem [resolvable:$true] %s68
      %74 = dma.hbm_to_vmem [thread:$0]  %s8, 1024, %s69, [#allocation6], 64, 64, 4
    $region37: #{tpu_custom_call.1} parent=1 // pred_fallthru
      _
    // Predicated region
    $region38: #{tpu_custom_call.1} parent=1 // pred_check
      _
    $region39: #{tpu_custom_call.1} parent=1 // pred_check_branch
      %76 = sbr.rel (0) target = $region41
    $region40: #{tpu_custom_call.1} parent=1 // pred_region
      _
    $region41: #{tpu_custom_call.1} parent=1 // pred_fallthru
      _
    // Predicated region
    $region42: #{tpu_custom_call.1} parent=1 // pred_check
      _
    $region43: #{tpu_custom_call.1} parent=1 // pred_check_branch
      %78 = sbr.rel (0) target = $region45
    $region44: #{tpu_custom_call.1} parent=1 // pred_region
      %s80 = ssub.s32 1024, 1024
      %81 = vsyncadd [#allocation9], %s80
      %s82 = sshll.u32 [#allocation8], 4
      %s83 = int_to_ptr.vmem [resolvable:$true] %s82
      %88 = dma.hbm_to_vmem [thread:$0]  %s10, 1024, %s83, [#allocation9], 64, 64, 4
    $region45: #{tpu_custom_call.1} parent=1 // pred_fallthru
      _
    // Predicated region
    $region46: #{tpu_custom_call.1} parent=1 // pred_check
      _
    $region47: #{tpu_custom_call.1} parent=1 // pred_check_branch
      %90 = sbr.rel (0) target = $region49
    $region48: #{tpu_custom_call.1} parent=1 // pred_region
      _
    $region49: #{tpu_custom_call.1} parent=1 // pred_fallthru
      _
    // Predicated region
    $region50: #{tpu_custom_call.1} parent=1 // pred_check
      _
    $region51: #{tpu_custom_call.1} parent=1 // pred_check_branch
      %92 = sbr.rel (0) target = $region53
    $region52: #{tpu_custom_call.1} parent=1 // pred_region
      %s94 = ssub.s32 3072, 3072
      %95 = vsyncadd [#allocation9], %s94
      %s96 = sshll.u32 [#allocation10], 4
      %s97 = int_to_ptr.vmem [resolvable:$true] %s96
      %102 = dma.hbm_to_vmem [thread:$0]  %s12, 3072, %s97, [#allocation9], 192, 192, 12
    $region53: #{tpu_custom_call.1} parent=1 // pred_fallthru
      _
    // Predicated region
    $region54: #{tpu_custom_call.1} parent=1 // pred_check
      _
    $region55: #{tpu_custom_call.1} parent=1 // pred_check_branch
      %104 = sbr.rel (0) target = $region57
    $region56: #{tpu_custom_call.1} parent=1 // pred_region
      _
    $region57: #{tpu_custom_call.1} parent=1 // pred_fallthru
      _
    // Predicated region
    $region58: #{tpu_custom_call.1} parent=1 // pred_check
      _
    $region59: #{tpu_custom_call.1} parent=1 // pred_check_branch
      %106 = sbr.rel (0) target = $region61
    $region60: #{tpu_custom_call.1} parent=1 // pred_region
      %107 = dma.done [#allocation3], 512
    $region61: #{tpu_custom_call.1} parent=1 // pred_fallthru
      _
    // Predicated region
    $region62: #{tpu_custom_call.1} parent=1 // pred_check
      _
    $region63: #{tpu_custom_call.1} parent=1 // pred_check_branch
      %109 = sbr.rel (0) target = $region65
    $region64: #{tpu_custom_call.1} parent=1 // pred_region
      %110 = dma.done [#allocation6], 2048
    $region65: #{tpu_custom_call.1} parent=1 // pred_fallthru
      _
    // Predicated region
    $region66: #{tpu_custom_call.1} parent=1 // pred_check
      _
    $region67: #{tpu_custom_call.1} parent=1 // pred_check_branch
      %112 = sbr.rel (0) target = $region69
    $region68: #{tpu_custom_call.1} parent=1 // pred_region
      %113 = dma.done [#allocation6], 1024
    $region69: #{tpu_custom_call.1} parent=1 // pred_fallthru
      _
    // Predicated region
    $region70: #{tpu_custom_call.1} parent=1 // pred_check
      _
    $region71: #{tpu_custom_call.1} parent=1 // pred_check_branch
      %115 = sbr.rel (0) target = $region73
    $region72: #{tpu_custom_call.1} parent=1 // pred_region
      %116 = dma.done [#allocation9], 1024
    $region73: #{tpu_custom_call.1} parent=1 // pred_fallthru
      _
    // Predicated region
    $region74: #{tpu_custom_call.1} parent=1 // pred_check
      _
    $region75: #{tpu_custom_call.1} parent=1 // pred_check_branch
      %118 = sbr.rel (0) target = $region77
    $region76: #{tpu_custom_call.1} parent=1 // pred_region
      %119 = dma.done [#allocation9], 3072
    $region77: #{tpu_custom_call.1} parent=1 // pred_fallthru
      _
    %v121 = vld [vmem:[#allocation2] sm:$0xff]
    %v122 = vld [vmem:[#allocation2 + $0x8] sm:$0xff]
    %v123 = vld [vmem:[#allocation2 + $0x10] sm:$0xff]
    %v124 = vld [vmem:[#allocation2 + $0x18] sm:$0xff]
    %v125 = vpack.c.bf16 %v122, %v121
    %v126 = vpack.c.bf16 %v124, %v123
    %v127 = vld [vmem:[%s4] sm:$0xf]
    %v128 = vld [vmem:[%s4 + $0x4] sm:$0xf]
    %v129 = vld [vmem:[%s4 + $0x8] sm:$0xf]
    %v130 = vld [vmem:[%s4 + $0xc] sm:$0xf]
    %v131 = vld [vmem:[%s4 + $0x10] sm:$0xf]
    %v132 = vld [vmem:[%s4 + $0x14] sm:$0xf]
    %v133 = vld [vmem:[%s4 + $0x18] sm:$0xf]
    %v134 = vld [vmem:[%s4 + $0x1c] sm:$0xf]
    %v135 = vld [vmem:[%s4 + $0x20] sm:$0xf]
    %v136 = vld [vmem:[%s4 + $0x24] sm:$0xf]
    %v137 = vld [vmem:[%s4 + $0x28] sm:$0xf]
    %v138 = vld [vmem:[%s4 + $0x2c] sm:$0xf]
    %v139 = vld [vmem:[%s4 + $0x30] sm:$0xf]
    %v140 = vld [vmem:[%s4 + $0x34] sm:$0xf]
    %v141 = vld [vmem:[%s4 + $0x38] sm:$0xf]
    %v142 = vld [vmem:[%s4 + $0x3c] sm:$0xf]
    %v143 = vld [vmem:[%s5] sm:$0x1]
    %v145 = vlaneseq
    %v146 = vshrl.u32 %v145, 7
    %v147 = vsub.s32 0, %v146
    %v148 = vrot.slane %v143, %v147
    %v166 = vunpack.c.l.b16 %v127
    %v167 = vunpack.c.l.b16 %v128
    %v168 = vunpack.c.l.b16 %v129
    %v169 = vunpack.c.l.b16 %v130
    %v170 = vunpack.c.l.b16 %v131
    %v171 = vunpack.c.l.b16 %v132
    %v172 = vunpack.c.l.b16 %v133
    %v173 = vunpack.c.l.b16 %v134
    %v174 = vunpack.c.l.b16 %v135
    %v175 = vunpack.c.l.b16 %v136
    %v176 = vunpack.c.l.b16 %v137
    %v177 = vunpack.c.l.b16 %v138
    %v178 = vunpack.c.l.b16 %v139
    %v179 = vunpack.c.l.b16 %v140
    %v180 = vunpack.c.l.b16 %v141
    %v181 = vunpack.c.l.b16 %v142
    %v182 = vpack.c.b16 %v167, %v166
    %v183 = vpack.c.b16 %v169, %v168
    %v184 = vpack.c.b16 %v171, %v170
    %v185 = vpack.c.b16 %v173, %v172
    %v186 = vpack.c.b16 %v175, %v174
    %v187 = vpack.c.b16 %v177, %v176
    %v188 = vpack.c.b16 %v179, %v178
    %v189 = vpack.c.b16 %v181, %v180
    %198 = vmatprep.subr.bf16.mxu0 0
    %199 = vmatpush1.bf16.msra.mxu0 %v189
    %200 = vmatprep.subr.bf16.mxu0 0
    %201 = vmatpush1.bf16.msra.mxu0 %v188
    %202 = vmatprep.subr.bf16.mxu0 0
    %203 = vmatpush1.bf16.msra.mxu0 %v187
    %204 = vmatprep.subr.bf16.mxu0 0
    %205 = vmatpush1.bf16.msra.mxu0 %v186
    %206 = vmatprep.subr.bf16.mxu0 0
    %207 = vmatpush1.bf16.msra.mxu0 %v185
    %208 = vmatprep.subr.bf16.mxu0 0
    %209 = vmatpush1.bf16.msra.mxu0 %v184
    %210 = vmatprep.subr.bf16.mxu0 0
    %211 = vmatpush1.bf16.msra.mxu0 %v183
    %212 = vmatprep.subr.bf16.mxu0 0
    %213 = vmatpush1.bf16.msra.mxu0 %v182
    %214 = vmatprep.subr.bf16.mxu0 0
    %215 = vmatpush2.bf16.msra.mxu0 0
    %216 = vmatprep.subr.bf16.mxu0 0
    %217 = vmatpush2.bf16.msra.mxu0 0
    %218 = vmatprep.subr.bf16.mxu0 0
    %219 = vmatpush2.bf16.msra.mxu0 0
    %220 = vmatprep.subr.bf16.mxu0 0
    %221 = vmatpush2.bf16.msra.mxu0 0
    %222 = vmatprep.subr.bf16.mxu0 0
    %223 = vmatpush2.bf16.msra.mxu0 0
    %224 = vmatprep.subr.bf16.mxu0 0
    %225 = vmatpush2.bf16.msra.mxu0 0
    %226 = vmatprep.subr.bf16.mxu0 0
    %227 = vmatpush2.bf16.msra.mxu0 0
    %228 = vmatprep.subr.bf16.mxu0 0
    %229 = vmatpush2.bf16.msra.mxu0 0
    %230 = vmatprep.mubr.bf16.mxu0 0
    %231 = vmatmul.mubr.bf16.gmra.mxu0 %v125
    %v232 = vpop.f32.mrf.mxu0
    %v233 = vadd.f32 %v148, %v232
    %v234 = vpop.f32.mrf.mxu0
    %v235 = vpop.f32.mrf.mxu0
    %v236 = vadd.f32 %v148, %v235
    %v237 = vpop.f32.mrf.mxu0
    %238 = vmatprep.mubr.bf16.mxu0 0
    %239 = vmatmul.mubr.bf16.gmra.mxu0 %v126
    %v240 = vpop.f32.mrf.mxu0
    %v241 = vadd.f32 %v148, %v240
    %v242 = vpop.f32.mrf.mxu0
    %v243 = vpop.f32.mrf.mxu0
    %v244 = vadd.f32 %v148, %v243
    %v245 = vpop.f32.mrf.mxu0
    %246 = vdwg.mxu0
    %v247 = vmul.f32 %v233, 0.5
    %v248 = vmul.f32 %v236, 0.5
    %v249 = vmul.f32 %v241, 0.5
    %v250 = vmul.f32 %v244, 0.5
    %v251 = vtanh.pop %v247
    %v252 = vtanh.pop %v248
    %v253 = vtanh.pop %v249
    %v254 = vtanh.pop %v250
    %v255 = vadd.f32 %v251, 1.0
    %v256 = vadd.f32 %v252, 1.0
    %v257 = vadd.f32 %v253, 1.0
    %v258 = vadd.f32 %v254, 1.0
    %v259 = vmul.f32 %v247, %v255
    %v260 = vmul.f32 %v248, %v256
    %v261 = vmul.f32 %v249, %v257
    %v262 = vmul.f32 %v250, %v258
    %v263 = vpack.c.bf16 %v260, %v259
    %v264 = vpack.c.bf16 %v262, %v261
    %v265 = vld [vmem:[#allocation5] sm:$0xff]
    %v266 = vld [vmem:[#allocation5 + $0x8] sm:$0xff]
    %v267 = vld [vmem:[#allocation5 + $0x10] sm:$0xff]
    %v268 = vld [vmem:[#allocation5 + $0x18] sm:$0xff]
    %v269 = vld [vmem:[#allocation5 + $0x20] sm:$0xff]
    %v270 = vld [vmem:[#allocation5 + $0x28] sm:$0xff]
    %v271 = vld [vmem:[#allocation5 + $0x30] sm:$0xff]
    %v272 = vld [vmem:[#allocation5 + $0x38] sm:$0xff]
    %v273 = vld [vmem:[#allocation5 + $0x40] sm:$0xff]
    %v274 = vld [vmem:[#allocation5 + $0x48] sm:$0xff]
    %v275 = vld [vmem:[#allocation5 + $0x50] sm:$0xff]
    %v276 = vld [vmem:[#allocation5 + $0x58] sm:$0xff]
    %v277 = vld [vmem:[#allocation5 + $0x60] sm:$0xff]
    %v278 = vld [vmem:[#allocation5 + $0x68] sm:$0xff]
    %v279 = vld [vmem:[#allocation5 + $0x70] sm:$0xff]
    %v280 = vld [vmem:[#allocation5 + $0x78] sm:$0xff]
    %v281 = vld [vmem:[%s7] sm:$0x3]
    %v283 = vlaneseq
    %v284 = vshrl.u32 %v283, 7
    %v285 = vsub.s32 0, %v284
    %v286 = vrot.slane %v281, %v285
    %v287 = vlaneseq
    %v288 = vshrl.u32 %v287, 7
    %v289 = vsub.s32 1, %v288
    %v290 = vrot.slane %v281, %v289
    %v309 = vunpack.c.l.b16 %v265
    %v310 = vunpack.c.h.b16 %v265
    %v311 = vunpack.c.l.b16 %v266
    %v312 = vunpack.c.h.b16 %v266
    %v313 = vunpack.c.l.b16 %v267
    %v314 = vunpack.c.h.b16 %v267
    %v315 = vunpack.c.l.b16 %v268
    %v316 = vunpack.c.h.b16 %v268
    %v317 = vunpack.c.l.b16 %v269
    %v318 = vunpack.c.h.b16 %v269
    %v319 = vunpack.c.l.b16 %v270
    %v320 = vunpack.c.h.b16 %v270
    %v321 = vunpack.c.l.b16 %v271
    %v322 = vunpack.c.h.b16 %v271
    %v323 = vunpack.c.l.b16 %v272
    %v324 = vunpack.c.h.b16 %v272
    %v325 = vunpack.c.l.b16 %v273
    %v326 = vunpack.c.h.b16 %v273
    %v327 = vunpack.c.l.b16 %v274
    %v328 = vunpack.c.h.b16 %v274
    %v329 = vunpack.c.l.b16 %v275
    %v330 = vunpack.c.h.b16 %v275
    %v331 = vunpack.c.l.b16 %v276
    %v332 = vunpack.c.h.b16 %v276
    %v333 = vunpack.c.l.b16 %v277
    %v334 = vunpack.c.h.b16 %v277
    %v335 = vunpack.c.l.b16 %v278
    %v336 = vunpack.c.h.b16 %v278
    %v337 = vunpack.c.l.b16 %v279
    %v338 = vunpack.c.h.b16 %v279
    %v339 = vunpack.c.l.b16 %v280
    %v340 = vunpack.c.h.b16 %v280
    %v341 = vpack.c.b16 %v311, %v309
    %v342 = vpack.c.b16 %v312, %v310
    %v343 = vpack.c.b16 %v315, %v313
    %v344 = vpack.c.b16 %v316, %v314
    %v345 = vpack.c.b16 %v319, %v317
    %v346 = vpack.c.b16 %v320, %v318
    %v347 = vpack.c.b16 %v323, %v321
    %v348 = vpack.c.b16 %v324, %v322
    %v349 = vpack.c.b16 %v327, %v325
    %v350 = vpack.c.b16 %v328, %v326
    %v351 = vpack.c.b16 %v331, %v329
    %v352 = vpack.c.b16 %v332, %v330
    %v353 = vpack.c.b16 %v335, %v333
    %v354 = vpack.c.b16 %v336, %v334
    %v355 = vpack.c.b16 %v339, %v337
    %v356 = vpack.c.b16 %v340, %v338
    %373 = vmatprep.subr.bf16.mxu0 %v356
    %374 = vmatpush1.bf16.msra.mxu0 %v355
    %375 = vmatprep.subr.bf16.mxu0 %v354
    %376 = vmatpush1.bf16.msra.mxu0 %v353
    %377 = vmatprep.subr.bf16.mxu0 %v352
    %378 = vmatpush1.bf16.msra.mxu0 %v351
    %379 = vmatprep.subr.bf16.mxu0 %v350
    %380 = vmatpush1.bf16.msra.mxu0 %v349
    %381 = vmatprep.subr.bf16.mxu0 %v348
    %382 = vmatpush1.bf16.msra.mxu0 %v347
    %383 = vmatprep.subr.bf16.mxu0 %v346
    %384 = vmatpush1.bf16.msra.mxu0 %v345
    %385 = vmatprep.subr.bf16.mxu0 %v344
    %386 = vmatpush1.bf16.msra.mxu0 %v343
    %387 = vmatprep.subr.bf16.mxu0 %v342
    %388 = vmatpush1.bf16.msra.mxu0 %v341
    %389 = vmatprep.subr.bf16.mxu0 0
    %390 = vmatpush2.bf16.msra.mxu0 0
    %391 = vmatprep.subr.bf16.mxu0 0
    %392 = vmatpush2.bf16.msra.mxu0 0
    %393 = vmatprep.subr.bf16.mxu0 0
    %394 = vmatpush2.bf16.msra.mxu0 0
    %395 = vmatprep.subr.bf16.mxu0 0
    %396 = vmatpush2.bf16.msra.mxu0 0
    %397 = vmatprep.subr.bf16.mxu0 0
    %398 = vmatpush2.bf16.msra.mxu0 0
    %399 = vmatprep.subr.bf16.mxu0 0
    %400 = vmatpush2.bf16.msra.mxu0 0
    %401 = vmatprep.subr.bf16.mxu0 0
    %402 = vmatpush2.bf16.msra.mxu0 0
    %403 = vmatprep.subr.bf16.mxu0 0
    %404 = vmatpush2.bf16.msra.mxu0 0
    %405 = vmatprep.mubr.bf16.mxu0 0
    %406 = vmatmul.mubr.bf16.gmra.mxu0 %v263
    %v407 = vpop.f32.mrf.mxu0
    %v408 = vadd.f32 %v286, %v407
    %v409 = vpop.f32.mrf.mxu0
    %v410 = vadd.f32 %v290, %v409
    %v411 = vpop.f32.mrf.mxu0
    %v412 = vadd.f32 %v286, %v411
    %v413 = vpop.f32.mrf.mxu0
    %v414 = vadd.f32 %v290, %v413
    %415 = vmatprep.mubr.bf16.mxu0 0
    %416 = vmatmul.mubr.bf16.gmra.mxu0 %v264
    %v417 = vpop.f32.mrf.mxu0
    %v418 = vadd.f32 %v286, %v417
    %v419 = vpop.f32.mrf.mxu0
    %v420 = vadd.f32 %v290, %v419
    %v421 = vpop.f32.mrf.mxu0
    %v422 = vadd.f32 %v286, %v421
    %v423 = vpop.f32.mrf.mxu0
    %v424 = vadd.f32 %v290, %v423
    %425 = vdwg.mxu0
    %v426 = vld [vmem:[%s1] sm:$0xff]
    %v427 = vld [vmem:[%s1 + $0x8] sm:$0xff]
    %v428 = vld [vmem:[%s1 + $0x10] sm:$0xff]
    %v429 = vld [vmem:[%s1 + $0x18] sm:$0xff]
    %vm430 = vcmp.gt.f32.partialorder %v426, 0.5
    %vm431 = vcmp.gt.f32.partialorder %v427, 0.5
    %vm432 = vcmp.gt.f32.partialorder %v428, 0.5
    %vm433 = vcmp.gt.f32.partialorder %v429, 0.5
    %v434 = vsel %vm430, 1, 0
    %v435 = vsel %vm431, 1, 0
    %v436 = vsel %vm432, 1, 0
    %v437 = vsel %vm433, 1, 0
    %438 = vset.pattern.permute.xlu0 0
    %439 = vperm.xlu0 %438, %v434
    %v440 = vpop.permute.xlu0 %439
    %441 = vset.pattern.permute.xlu0 0
    %442 = vperm.xlu0 %441, %v435
    %v443 = vpop.permute.xlu0 %442
    %444 = vset.pattern.permute.xlu0 0
    %445 = vperm.xlu0 %444, %v436
    %v446 = vpop.permute.xlu0 %445
    %447 = vset.pattern.permute.xlu0 0
    %448 = vperm.xlu0 %447, %v437
    %v449 = vpop.permute.xlu0 %448
    %vm450 = vcmp.eq.s32.totalorder %v440, 1
    %vm451 = vcmp.eq.s32.totalorder %v443, 1
    %vm452 = vcmp.eq.s32.totalorder %v446, 1
    %vm453 = vcmp.eq.s32.totalorder %v449, 1
    %v454 = vsel %vm450, %v408, %v410
    %v455 = vsel %vm451, %v412, %v414
    %v456 = vsel %vm452, %v418, %v420
    %v457 = vsel %vm453, %v422, %v424
    %v458 = vld [vmem:[#allocation7] sm:$0xf]
    %v459 = vld [vmem:[#allocation7 + $0x4] sm:$0xf]
    %v460 = vld [vmem:[#allocation7 + $0x8] sm:$0xf]
    %v461 = vld [vmem:[#allocation7 + $0xc] sm:$0xf]
    %v462 = vld [vmem:[#allocation7 + $0x10] sm:$0xf]
    %v463 = vld [vmem:[#allocation7 + $0x14] sm:$0xf]
    %v464 = vld [vmem:[#allocation7 + $0x18] sm:$0xf]
    %v465 = vld [vmem:[#allocation7 + $0x1c] sm:$0xf]
    %v466 = vld [vmem:[#allocation7 + $0x20] sm:$0xf]
    %v467 = vld [vmem:[#allocation7 + $0x24] sm:$0xf]
    %v468 = vld [vmem:[#allocation7 + $0x28] sm:$0xf]
    %v469 = vld [vmem:[#allocation7 + $0x2c] sm:$0xf]
    %v470 = vld [vmem:[#allocation7 + $0x30] sm:$0xf]
    %v471 = vld [vmem:[#allocation7 + $0x34] sm:$0xf]
    %v472 = vld [vmem:[#allocation7 + $0x38] sm:$0xf]
    %v473 = vld [vmem:[#allocation7 + $0x3c] sm:$0xf]
    %v474 = vld [vmem:[%s9] sm:$0x1]
    %v476 = vlaneseq
    %v477 = vshrl.u32 %v476, 7
    %v478 = vsub.s32 0, %v477
    %v479 = vrot.slane %v474, %v478
    %v497 = vunpack.c.l.b16 %v458
    %v498 = vunpack.c.l.b16 %v459
    %v499 = vunpack.c.l.b16 %v460
    %v500 = vunpack.c.l.b16 %v461
    %v501 = vunpack.c.l.b16 %v462
    %v502 = vunpack.c.l.b16 %v463
    %v503 = vunpack.c.l.b16 %v464
    %v504 = vunpack.c.l.b16 %v465
    %v505 = vunpack.c.l.b16 %v466
    %v506 = vunpack.c.l.b16 %v467
    %v507 = vunpack.c.l.b16 %v468
    %v508 = vunpack.c.l.b16 %v469
    %v509 = vunpack.c.l.b16 %v470
    %v510 = vunpack.c.l.b16 %v471
    %v511 = vunpack.c.l.b16 %v472
    %v512 = vunpack.c.l.b16 %v473
    %v513 = vpack.c.b16 %v498, %v497
    %v514 = vpack.c.b16 %v500, %v499
    %v515 = vpack.c.b16 %v502, %v501
    %v516 = vpack.c.b16 %v504, %v503
    %v517 = vpack.c.b16 %v506, %v505
    %v518 = vpack.c.b16 %v508, %v507
    %v519 = vpack.c.b16 %v510, %v509
    %v520 = vpack.c.b16 %v512, %v511
    %529 = vmatprep.subr.bf16.mxu0 0
    %530 = vmatpush1.bf16.msra.mxu0 %v520
    %531 = vmatprep.subr.bf16.mxu0 0
    %532 = vmatpush1.bf16.msra.mxu0 %v519
    %533 = vmatprep.subr.bf16.mxu0 0
    %534 = vmatpush1.bf16.msra.mxu0 %v518
    %535 = vmatprep.subr.bf16.mxu0 0
    %536 = vmatpush1.bf16.msra.mxu0 %v517
    %537 = vmatprep.subr.bf16.mxu0 0
    %538 = vmatpush1.bf16.msra.mxu0 %v516
    %539 = vmatprep.subr.bf16.mxu0 0
    %540 = vmatpush1.bf16.msra.mxu0 %v515
    %541 = vmatprep.subr.bf16.mxu0 0
    %542 = vmatpush1.bf16.msra.mxu0 %v514
    %543 = vmatprep.subr.bf16.mxu0 0
    %544 = vmatpush1.bf16.msra.mxu0 %v513
    %545 = vmatprep.subr.bf16.mxu0 0
    %546 = vmatpush2.bf16.msra.mxu0 0
    %547 = vmatprep.subr.bf16.mxu0 0
    %548 = vmatpush2.bf16.msra.mxu0 0
    %549 = vmatprep.subr.bf16.mxu0 0
    %550 = vmatpush2.bf16.msra.mxu0 0
    %551 = vmatprep.subr.bf16.mxu0 0
    %552 = vmatpush2.bf16.msra.mxu0 0
    %553 = vmatprep.subr.bf16.mxu0 0
    %554 = vmatpush2.bf16.msra.mxu0 0
    %555 = vmatprep.subr.bf16.mxu0 0
    %556 = vmatpush2.bf16.msra.mxu0 0
    %557 = vmatprep.subr.bf16.mxu0 0
    %558 = vmatpush2.bf16.msra.mxu0 0
    %559 = vmatprep.subr.bf16.mxu0 0
    %560 = vmatpush2.bf16.msra.mxu0 0
    %561 = vmatprep.mubr.bf16.mxu0 0
    %562 = vmatmul.mubr.bf16.gmra.mxu0 %v125
    %v563 = vpop.f32.mrf.mxu0
    %v564 = vadd.f32 %v479, %v563
    %v565 = vpop.f32.mrf.mxu0
    %v566 = vpop.f32.mrf.mxu0
    %v567 = vadd.f32 %v479, %v566
    %v568 = vpop.f32.mrf.mxu0
    %569 = vmatprep.mubr.bf16.mxu0 0
    %570 = vmatmul.mubr.bf16.gmra.mxu0 %v126
    %v571 = vpop.f32.mrf.mxu0
    %v572 = vadd.f32 %v479, %v571
    %v573 = vpop.f32.mrf.mxu0
    %v574 = vpop.f32.mrf.mxu0
    %v575 = vadd.f32 %v479, %v574
    %v576 = vpop.f32.mrf.mxu0
    %577 = vdwg.mxu0
    %v578 = vmul.f32 %v564, 0.5
    %v579 = vmul.f32 %v567, 0.5
    %v580 = vmul.f32 %v572, 0.5
    %v581 = vmul.f32 %v575, 0.5
    %v582 = vtanh.pop %v578
    %v583 = vtanh.pop %v579
    %v584 = vtanh.pop %v580
    %v585 = vtanh.pop %v581
    %v586 = vadd.f32 %v582, 1.0
    %v587 = vadd.f32 %v583, 1.0
    %v588 = vadd.f32 %v584, 1.0
    %v589 = vadd.f32 %v585, 1.0
    %v590 = vmul.f32 %v578, %v586
    %v591 = vmul.f32 %v579, %v587
    %v592 = vmul.f32 %v580, %v588
    %v593 = vmul.f32 %v581, %v589
    %v594 = vpack.c.bf16 %v591, %v590
    %v595 = vpack.c.bf16 %v593, %v592
    %v596 = vld [vmem:[#allocation8] sm:$0xf]
    %v597 = vld [vmem:[#allocation8 + $0x4] sm:$0xf]
    %v598 = vld [vmem:[#allocation8 + $0x8] sm:$0xf]
    %v599 = vld [vmem:[#allocation8 + $0xc] sm:$0xf]
    %v600 = vld [vmem:[#allocation8 + $0x10] sm:$0xf]
    %v601 = vld [vmem:[#allocation8 + $0x14] sm:$0xf]
    %v602 = vld [vmem:[#allocation8 + $0x18] sm:$0xf]
    %v603 = vld [vmem:[#allocation8 + $0x1c] sm:$0xf]
    %v604 = vld [vmem:[#allocation8 + $0x20] sm:$0xf]
    %v605 = vld [vmem:[#allocation8 + $0x24] sm:$0xf]
    %v606 = vld [vmem:[#allocation8 + $0x28] sm:$0xf]
    %v607 = vld [vmem:[#allocation8 + $0x2c] sm:$0xf]
    %v608 = vld [vmem:[#allocation8 + $0x30] sm:$0xf]
    %v609 = vld [vmem:[#allocation8 + $0x34] sm:$0xf]
    %v610 = vld [vmem:[#allocation8 + $0x38] sm:$0xf]
    %v611 = vld [vmem:[#allocation8 + $0x3c] sm:$0xf]
    %v612 = vld [vmem:[%s11] sm:$0x1]
    %v614 = vlaneseq
    %v615 = vshrl.u32 %v614, 7
    %v616 = vsub.s32 0, %v615
    %v617 = vrot.slane %v612, %v616
    %v635 = vunpack.c.l.b16 %v596
    %v636 = vunpack.c.l.b16 %v597
    %v637 = vunpack.c.l.b16 %v598
    %v638 = vunpack.c.l.b16 %v599
    %v639 = vunpack.c.l.b16 %v600
    %v640 = vunpack.c.l.b16 %v601
    %v641 = vunpack.c.l.b16 %v602
    %v642 = vunpack.c.l.b16 %v603
    %v643 = vunpack.c.l.b16 %v604
    %v644 = vunpack.c.l.b16 %v605
    %v645 = vunpack.c.l.b16 %v606
    %v646 = vunpack.c.l.b16 %v607
    %v647 = vunpack.c.l.b16 %v608
    %v648 = vunpack.c.l.b16 %v609
    %v649 = vunpack.c.l.b16 %v610
    %v650 = vunpack.c.l.b16 %v611
    %v651 = vpack.c.b16 %v636, %v635
    %v652 = vpack.c.b16 %v638, %v637
    %v653 = vpack.c.b16 %v640, %v639
    %v654 = vpack.c.b16 %v642, %v641
    %v655 = vpack.c.b16 %v644, %v643
    %v656 = vpack.c.b16 %v646, %v645
    %v657 = vpack.c.b16 %v648, %v647
    %v658 = vpack.c.b16 %v650, %v649
    %667 = vmatprep.subr.bf16.mxu0 0
    %668 = vmatpush1.bf16.msra.mxu0 %v658
    %669 = vmatprep.subr.bf16.mxu0 0
    %670 = vmatpush1.bf16.msra.mxu0 %v657
    %671 = vmatprep.subr.bf16.mxu0 0
    %672 = vmatpush1.bf16.msra.mxu0 %v656
    %673 = vmatprep.subr.bf16.mxu0 0
    %674 = vmatpush1.bf16.msra.mxu0 %v655
    %675 = vmatprep.subr.bf16.mxu0 0
    %676 = vmatpush1.bf16.msra.mxu0 %v654
    %677 = vmatprep.subr.bf16.mxu0 0
    %678 = vmatpush1.bf16.msra.mxu0 %v653
    %679 = vmatprep.subr.bf16.mxu0 0
    %680 = vmatpush1.bf16.msra.mxu0 %v652
    %681 = vmatprep.subr.bf16.mxu0 0
    %682 = vmatpush1.bf16.msra.mxu0 %v651
    %683 = vmatprep.subr.bf16.mxu0 0
    %684 = vmatpush2.bf16.msra.mxu0 0
    %685 = vmatprep.subr.bf16.mxu0 0
    %686 = vmatpush2.bf16.msra.mxu0 0
    %687 = vmatprep.subr.bf16.mxu0 0
    %688 = vmatpush2.bf16.msra.mxu0 0
    %689 = vmatprep.subr.bf16.mxu0 0
    %690 = vmatpush2.bf16.msra.mxu0 0
    %691 = vmatprep.subr.bf16.mxu0 0
    %692 = vmatpush2.bf16.msra.mxu0 0
    %693 = vmatprep.subr.bf16.mxu0 0
    %694 = vmatpush2.bf16.msra.mxu0 0
    %695 = vmatprep.subr.bf16.mxu0 0
    %696 = vmatpush2.bf16.msra.mxu0 0
    %697 = vmatprep.subr.bf16.mxu0 0
    %698 = vmatpush2.bf16.msra.mxu0 0
    %699 = vmatprep.mubr.bf16.mxu0 0
    %700 = vmatmul.mubr.bf16.gmra.mxu0 %v594
    %v701 = vpop.f32.mrf.mxu0
    %v702 = vadd.f32 %v617, %v701
    %v703 = vpop.f32.mrf.mxu0
    %v704 = vpop.f32.mrf.mxu0
    %v705 = vadd.f32 %v617, %v704
    %v706 = vpop.f32.mrf.mxu0
    %707 = vmatprep.mubr.bf16.mxu0 0
    %708 = vmatmul.mubr.bf16.gmra.mxu0 %v595
    %v709 = vpop.f32.mrf.mxu0
    %v710 = vadd.f32 %v617, %v709
    %v711 = vpop.f32.mrf.mxu0
    %v712 = vpop.f32.mrf.mxu0
    %v713 = vadd.f32 %v617, %v712
    %v714 = vpop.f32.mrf.mxu0
    %715 = vdwg.mxu0
    %v716 = vld [vmem:[%s2] sm:$0xff]
    %v717 = vld [vmem:[%s2 + $0x8] sm:$0xff]
    %v718 = vld [vmem:[%s2 + $0x10] sm:$0xff]
    %v719 = vld [vmem:[%s2 + $0x18] sm:$0xff]
    %vm720 = vcmp.gt.f32.partialorder %v716, 0.5
    %vm721 = vcmp.gt.f32.partialorder %v717, 0.5
    %vm722 = vcmp.gt.f32.partialorder %v718, 0.5
    %vm723 = vcmp.gt.f32.partialorder %v719, 0.5
    %v724 = vsel %vm720, 1, 0
    %v725 = vsel %vm721, 1, 0
    %v726 = vsel %vm722, 1, 0
    %v727 = vsel %vm723, 1, 0
    %728 = vset.pattern.permute.xlu0 0
    %729 = vperm.xlu0 %728, %v724
    %v730 = vpop.permute.xlu0 %729
    %731 = vset.pattern.permute.xlu0 0
    %732 = vperm.xlu0 %731, %v725
    %v733 = vpop.permute.xlu0 %732
    %734 = vset.pattern.permute.xlu0 0
    %735 = vperm.xlu0 %734, %v726
    %v736 = vpop.permute.xlu0 %735
    %737 = vset.pattern.permute.xlu0 0
    %738 = vperm.xlu0 %737, %v727
    %v739 = vpop.permute.xlu0 %738
    %vm740 = vcmp.eq.s32.totalorder %v730, 1
    %vm741 = vcmp.eq.s32.totalorder %v733, 1
    %vm742 = vcmp.eq.s32.totalorder %v736, 1
    %vm743 = vcmp.eq.s32.totalorder %v739, 1
    %v744 = vsel %vm740, %v702, %v454
    %v745 = vsel %vm741, %v705, %v455
    %v746 = vsel %vm742, %v710, %v456
    %v747 = vsel %vm743, %v713, %v457
    %v748 = vld [vmem:[%s3] sm:$0x1]
    %v750 = vlaneseq
    %v751 = vshrl.u32 %v750, 7
    %v752 = vsub.s32 0, %v751
    %v753 = vrot.slane %v748, %v752
    %v755 = vadd.f32 %v744, %v753
    %v756 = vadd.f32 %v745, %v753
    %v757 = vadd.f32 %v746, %v753
    %v758 = vadd.f32 %v747, %v753
    %v759 = vpack.c.bf16 %v756, %v755
    %v760 = vpack.c.bf16 %v758, %v757
    %v761 = vld [vmem:[#allocation10] sm:$0xff]
    %v762 = vld [vmem:[#allocation10 + $0x8] sm:$0xf]
    %v763 = vld [vmem:[#allocation10 + $0xc] sm:$0xff]
    %v764 = vld [vmem:[#allocation10 + $0x14] sm:$0xf]
    %v765 = vld [vmem:[#allocation10 + $0x18] sm:$0xff]
    %v766 = vld [vmem:[#allocation10 + $0x20] sm:$0xf]
    %v767 = vld [vmem:[#allocation10 + $0x24] sm:$0xff]
    %v768 = vld [vmem:[#allocation10 + $0x2c] sm:$0xf]
    %v769 = vld [vmem:[#allocation10 + $0x30] sm:$0xff]
    %v770 = vld [vmem:[#allocation10 + $0x38] sm:$0xf]
    %v771 = vld [vmem:[#allocation10 + $0x3c] sm:$0xff]
    %v772 = vld [vmem:[#allocation10 + $0x44] sm:$0xf]
    %v773 = vld [vmem:[#allocation10 + $0x48] sm:$0xff]
    %v774 = vld [vmem:[#allocation10 + $0x50] sm:$0xf]
    %v775 = vld [vmem:[#allocation10 + $0x54] sm:$0xff]
    %v776 = vld [vmem:[#allocation10 + $0x5c] sm:$0xf]
    %v777 = vld [vmem:[#allocation10 + $0x60] sm:$0xff]
    %v778 = vld [vmem:[#allocation10 + $0x68] sm:$0xf]
    %v779 = vld [vmem:[#allocation10 + $0x6c] sm:$0xff]
    %v780 = vld [vmem:[#allocation10 + $0x74] sm:$0xf]
    %v781 = vld [vmem:[#allocation10 + $0x78] sm:$0xff]
    %v782 = vld [vmem:[#allocation10 + $0x80] sm:$0xf]
    %v783 = vld [vmem:[#allocation10 + $0x84] sm:$0xff]
    %v784 = vld [vmem:[#allocation10 + $0x8c] sm:$0xf]
    %v785 = vld [vmem:[#allocation10 + $0x90] sm:$0xff]
    %v786 = vld [vmem:[#allocation10 + $0x98] sm:$0xf]
    %v787 = vld [vmem:[#allocation10 + $0x9c] sm:$0xff]
    %v788 = vld [vmem:[#allocation10 + $0xa4] sm:$0xf]
    %v789 = vld [vmem:[#allocation10 + $0xa8] sm:$0xff]
    %v790 = vld [vmem:[#allocation10 + $0xb0] sm:$0xf]
    %v791 = vld [vmem:[#allocation10 + $0xb4] sm:$0xff]
    %v792 = vld [vmem:[#allocation10 + $0xbc] sm:$0xf]
    %v793 = vld [vmem:[%s13] sm:$0x7]
    %v795 = vlaneseq
    %v796 = vshrl.u32 %v795, 7
    %v797 = vsub.s32 0, %v796
    %v798 = vrot.slane %v793, %v797
    %v799 = vlaneseq
    %v800 = vshrl.u32 %v799, 7
    %v801 = vsub.s32 1, %v800
    %v802 = vrot.slane %v793, %v801
    %v803 = vlaneseq
    %v804 = vshrl.u32 %v803, 7
    %v805 = vsub.s32 2, %v804
    %v806 = vrot.slane %v793, %v805
    %v842 = vunpack.c.l.b16 %v761
    %v843 = vunpack.c.h.b16 %v761
    %v844 = vunpack.c.l.b16 %v762
    %v845 = vunpack.c.l.b16 %v763
    %v846 = vunpack.c.h.b16 %v763
    %v847 = vunpack.c.l.b16 %v764
    %v848 = vunpack.c.l.b16 %v765
    %v849 = vunpack.c.h.b16 %v765
    %v850 = vunpack.c.l.b16 %v766
    %v851 = vunpack.c.l.b16 %v767
    %v852 = vunpack.c.h.b16 %v767
    %v853 = vunpack.c.l.b16 %v768
    %v854 = vunpack.c.l.b16 %v769
    %v855 = vunpack.c.h.b16 %v769
    %v856 = vunpack.c.l.b16 %v770
    %v857 = vunpack.c.l.b16 %v771
    %v858 = vunpack.c.h.b16 %v771
    %v859 = vunpack.c.l.b16 %v772
    %v860 = vunpack.c.l.b16 %v773
    %v861 = vunpack.c.h.b16 %v773
    %v862 = vunpack.c.l.b16 %v774
    %v863 = vunpack.c.l.b16 %v775
    %v864 = vunpack.c.h.b16 %v775
    %v865 = vunpack.c.l.b16 %v776
    %v866 = vunpack.c.l.b16 %v777
    %v867 = vunpack.c.h.b16 %v777
    %v868 = vunpack.c.l.b16 %v778
    %v869 = vunpack.c.l.b16 %v779
    %v870 = vunpack.c.h.b16 %v779
    %v871 = vunpack.c.l.b16 %v780
    %v872 = vunpack.c.l.b16 %v781
    %v873 = vunpack.c.h.b16 %v781
    %v874 = vunpack.c.l.b16 %v782
    %v875 = vunpack.c.l.b16 %v783
    %v876 = vunpack.c.h.b16 %v783
    %v877 = vunpack.c.l.b16 %v784
    %v878 = vunpack.c.l.b16 %v785
    %v879 = vunpack.c.h.b16 %v785
    %v880 = vunpack.c.l.b16 %v786
    %v881 = vunpack.c.l.b16 %v787
    %v882 = vunpack.c.h.b16 %v787
    %v883 = vunpack.c.l.b16 %v788
    %v884 = vunpack.c.l.b16 %v789
    %v885 = vunpack.c.h.b16 %v789
    %v886 = vunpack.c.l.b16 %v790
    %v887 = vunpack.c.l.b16 %v791
    %v888 = vunpack.c.h.b16 %v791
    %v889 = vunpack.c.l.b16 %v792
    %v890 = vpack.c.b16 %v845, %v842
    %v891 = vpack.c.b16 %v846, %v843
    %v892 = vpack.c.b16 %v847, %v844
    %v893 = vpack.c.b16 %v851, %v848
    %v894 = vpack.c.b16 %v852, %v849
    %v895 = vpack.c.b16 %v853, %v850
    %v896 = vpack.c.b16 %v857, %v854
    %v897 = vpack.c.b16 %v858, %v855
    %v898 = vpack.c.b16 %v859, %v856
    %v899 = vpack.c.b16 %v863, %v860
    %v900 = vpack.c.b16 %v864, %v861
    %v901 = vpack.c.b16 %v865, %v862
    %v902 = vpack.c.b16 %v869, %v866
    %v903 = vpack.c.b16 %v870, %v867
    %v904 = vpack.c.b16 %v871, %v868
    %v905 = vpack.c.b16 %v875, %v872
    %v906 = vpack.c.b16 %v876, %v873
    %v907 = vpack.c.b16 %v877, %v874
    %v908 = vpack.c.b16 %v881, %v878
    %v909 = vpack.c.b16 %v882, %v879
    %v910 = vpack.c.b16 %v883, %v880
    %v911 = vpack.c.b16 %v887, %v884
    %v912 = vpack.c.b16 %v888, %v885
    %v913 = vpack.c.b16 %v889, %v886
    %938 = vmatprep.subr.bf16.mxu0 %v912
    %939 = vmatpush1.bf16.msra.mxu0 %v911
    %940 = vmatprep.subr.bf16.mxu0 %v909
    %941 = vmatpush1.bf16.msra.mxu0 %v908
    %942 = vmatprep.subr.bf16.mxu0 %v906
    %943 = vmatpush1.bf16.msra.mxu0 %v905
    %944 = vmatprep.subr.bf16.mxu0 %v903
    %945 = vmatpush1.bf16.msra.mxu0 %v902
    %946 = vmatprep.subr.bf16.mxu0 %v900
    %947 = vmatpush1.bf16.msra.mxu0 %v899
    %948 = vmatprep.subr.bf16.mxu0 %v897
    %949 = vmatpush1.bf16.msra.mxu0 %v896
    %950 = vmatprep.subr.bf16.mxu0 %v894
    %951 = vmatpush1.bf16.msra.mxu0 %v893
    %952 = vmatprep.subr.bf16.mxu0 %v891
    %953 = vmatpush1.bf16.msra.mxu0 %v890
    %954 = vmatprep.subr.bf16.mxu0 0
    %955 = vmatpush2.bf16.msra.mxu0 0
    %956 = vmatprep.subr.bf16.mxu0 0
    %957 = vmatpush2.bf16.msra.mxu0 0
    %958 = vmatprep.subr.bf16.mxu0 0
    %959 = vmatpush2.bf16.msra.mxu0 0
    %960 = vmatprep.subr.bf16.mxu0 0
    %961 = vmatpush2.bf16.msra.mxu0 0
    %962 = vmatprep.subr.bf16.mxu0 0
    %963 = vmatpush2.bf16.msra.mxu0 0
    %964 = vmatprep.subr.bf16.mxu0 0
    %965 = vmatpush2.bf16.msra.mxu0 0
    %966 = vmatprep.subr.bf16.mxu0 0
    %967 = vmatpush2.bf16.msra.mxu0 0
    %968 = vmatprep.subr.bf16.mxu0 0
    %969 = vmatpush2.bf16.msra.mxu0 0
    %970 = vmatprep.mubr.bf16.mxu0 0
    %971 = vmatmul.mubr.bf16.gmra.mxu0 %v759
    %v972 = vpop.f32.mrf.mxu0
    %v973 = vadd.f32 %v798, %v972
    %v974 = vpop.f32.mrf.mxu0
    %v975 = vadd.f32 %v802, %v974
    %v976 = vpop.f32.mrf.mxu0
    %v977 = vadd.f32 %v798, %v976
    %v978 = vpop.f32.mrf.mxu0
    %v979 = vadd.f32 %v802, %v978
    %980 = vmatprep.mubr.bf16.mxu0 0
    %981 = vmatmul.mubr.bf16.gmra.mxu0 %v760
    %v982 = vpop.f32.mrf.mxu0
    %v983 = vadd.f32 %v798, %v982
    %v984 = vpop.f32.mrf.mxu0
    %v985 = vadd.f32 %v802, %v984
    %v986 = vpop.f32.mrf.mxu0
    %v987 = vadd.f32 %v798, %v986
    %v988 = vpop.f32.mrf.mxu0
    %v989 = vadd.f32 %v802, %v988
    %990 = vdwg.mxu0
    %991 = vmatprep.subr.bf16.mxu0 0
    %992 = vmatpush1.bf16.msra.mxu0 %v913
    %993 = vmatprep.subr.bf16.mxu0 0
    %994 = vmatpush1.bf16.msra.mxu0 %v910
    %995 = vmatprep.subr.bf16.mxu0 0
    %996 = vmatpush1.bf16.msra.mxu0 %v907
    %997 = vmatprep.subr.bf16.mxu0 0
    %998 = vmatpush1.bf16.msra.mxu0 %v904
    %999 = vmatprep.subr.bf16.mxu0 0
    %1000 = vmatpush1.bf16.msra.mxu0 %v901
    %1001 = vmatprep.subr.bf16.mxu0 0
    %1002 = vmatpush1.bf16.msra.mxu0 %v898
    %1003 = vmatprep.subr.bf16.mxu0 0
    %1004 = vmatpush1.bf16.msra.mxu0 %v895
    %1005 = vmatprep.subr.bf16.mxu0 0
    %1006 = vmatpush1.bf16.msra.mxu0 %v892
    %1007 = vmatprep.subr.bf16.mxu0 0
    %1008 = vmatpush2.bf16.msra.mxu0 0
    %1009 = vmatprep.subr.bf16.mxu0 0
    %1010 = vmatpush2.bf16.msra.mxu0 0
    %1011 = vmatprep.subr.bf16.mxu0 0
    %1012 = vmatpush2.bf16.msra.mxu0 0
    %1013 = vmatprep.subr.bf16.mxu0 0
    %1014 = vmatpush2.bf16.msra.mxu0 0
    %1015 = vmatprep.subr.bf16.mxu0 0
    %1016 = vmatpush2.bf16.msra.mxu0 0
    %1017 = vmatprep.subr.bf16.mxu0 0
    %1018 = vmatpush2.bf16.msra.mxu0 0
    %1019 = vmatprep.subr.bf16.mxu0 0
    %1020 = vmatpush2.bf16.msra.mxu0 0
    %1021 = vmatprep.subr.bf16.mxu0 0
    %1022 = vmatpush2.bf16.msra.mxu0 0
    %1023 = vmatprep.mubr.bf16.mxu0 0
    %1024 = vmatmul.mubr.bf16.gmra.mxu0 %v759
    %v1025 = vpop.f32.mrf.mxu0
    %v1026 = vadd.f32 %v806, %v1025
    %v1027 = vpop.f32.mrf.mxu0
    %v1028 = vpop.f32.mrf.mxu0
    %v1029 = vadd.f32 %v806, %v1028
    %v1030 = vpop.f32.mrf.mxu0
    %1031 = vmatprep.mubr.bf16.mxu0 0
    %1032 = vmatmul.mubr.bf16.gmra.mxu0 %v760
    %v1033 = vpop.f32.mrf.mxu0
    %v1034 = vadd.f32 %v806, %v1033
    %v1035 = vpop.f32.mrf.mxu0
    %v1036 = vpop.f32.mrf.mxu0
    %v1037 = vadd.f32 %v806, %v1036
    %v1038 = vpop.f32.mrf.mxu0
    %1039 = vdwg.mxu0
    %1040 = vst [vmem:[#allocation11] sm:$0xff] %v973
    %1041 = vst [vmem:[#allocation11 + $0x8] sm:$0xff] %v977
    %1042 = vst [vmem:[#allocation11 + $0x10] sm:$0xff] %v983
    %1043 = vst [vmem:[#allocation11 + $0x18] sm:$0xff] %v987
    %1044 = vst [vmem:[#allocation12] sm:$0xff] %v975
    %1045 = vst [vmem:[#allocation12 + $0x8] sm:$0xff] %v979
    %1046 = vst [vmem:[#allocation12 + $0x10] sm:$0xff] %v985
    %1047 = vst [vmem:[#allocation12 + $0x18] sm:$0xff] %v989
    %1048 = vst [vmem:[#allocation14] sm:$0xff] %v1026
    %1049 = vst [vmem:[#allocation14 + $0x8] sm:$0xff] %v1029
    %1050 = vst [vmem:[#allocation14 + $0x10] sm:$0xff] %v1034
    %1051 = vst [vmem:[#allocation14 + $0x18] sm:$0xff] %v1037
    // Predicated region
    $region78: #{tpu_custom_call.1} parent=1 // pred_check
      _
    $region79: #{tpu_custom_call.1} parent=1 // pred_check_branch
      %1053 = sbr.rel (0) target = $region81
    $region80: #{tpu_custom_call.1} parent=1 // pred_region
      %s1055 = ssub.s32 512, 512
      %1056 = vsyncadd [#allocation4], %s1055
      %s1057 = sshll.u32 [#allocation11], 4
      %s1058 = int_to_ptr.vmem [resolvable:$true] %s1057
      %1063 = dma.vmem_to_hbm [thread:$0]  %s1058, 512, %s14, [#allocation4], 128, 128, 8
    $region81: #{tpu_custom_call.1} parent=1 // pred_fallthru
      _
    // Predicated region
    $region82: #{tpu_custom_call.1} parent=1 // pred_check
      _
    $region83: #{tpu_custom_call.1} parent=1 // pred_check_branch
      %1065 = sbr.rel (0) target = $region85
    $region84: #{tpu_custom_call.1} parent=1 // pred_region
      %s1067 = ssub.s32 512, 512
      %1068 = vsyncadd [#allocation13], %s1067
      %s1069 = sshll.u32 [#allocation12], 4
      %s1070 = int_to_ptr.vmem [resolvable:$true] %s1069
      %1075 = dma.vmem_to_hbm [thread:$0]  %s1070, 512, %s15, [#allocation13], 128, 128, 8
    $region85: #{tpu_custom_call.1} parent=1 // pred_fallthru
      _
    // Predicated region
    $region86: #{tpu_custom_call.1} parent=1 // pred_check
      _
    $region87: #{tpu_custom_call.1} parent=1 // pred_check_branch
      %1077 = sbr.rel (0) target = $region89
    $region88: #{tpu_custom_call.1} parent=1 // pred_region
      %s1079 = ssub.s32 512, 512
      %1080 = vsyncadd [#allocation13], %s1079
      %s1081 = sshll.u32 [#allocation14], 4
      %s1082 = int_to_ptr.vmem [resolvable:$true] %s1081
      %1087 = dma.vmem_to_hbm [thread:$0]  %s1082, 512, %s16, [#allocation13], 128, 128, 8
    $region89: #{tpu_custom_call.1} parent=1 // pred_fallthru
      _
    // Predicated region
    $region90: #{tpu_custom_call.1} parent=1 // pred_check
      _
    $region91: #{tpu_custom_call.1} parent=1 // pred_check_branch
      %1089 = sbr.rel (0) target = $region93
    $region92: #{tpu_custom_call.1} parent=1 // pred_region
      %1090 = dma.done [#allocation4], 512
    $region93: #{tpu_custom_call.1} parent=1 // pred_fallthru
      _
    // Predicated region
    $region94: #{tpu_custom_call.1} parent=1 // pred_check
      _
    $region95: #{tpu_custom_call.1} parent=1 // pred_check_branch
      %1092 = sbr.rel (0) target = $region97
    $region96: #{tpu_custom_call.1} parent=1 // pred_region
      %1093 = dma.done [#allocation13], 512
    $region97: #{tpu_custom_call.1} parent=1 // pred_fallthru
      _
    // Predicated region
    $region98: #{tpu_custom_call.1} parent=1 // pred_check
      _
    $region99: #{tpu_custom_call.1} parent=1 // pred_check_branch
      %1095 = sbr.rel (0) target = $region101
    $region100: #{tpu_custom_call.1} parent=1 // pred_region
      %1096 = dma.done [#allocation13], 512
    $region101: #{tpu_custom_call.1} parent=1 // pred_fallthru
      _
    %1097 = vsyncpa [#allocation3], 1
    %1098 = vsyncpa [#allocation6], 1
    %1099 = vsyncpa [#allocation9], 1
    %1100 = vsyncpa [#allocation4], 1
    %1101 = vsyncpa [#allocation13], 1

</llo_original>
